<compile_context>
chip_gen: v5e
topology: v5e:2x2
jax: 0.10.0
libtpu: 0.0.40
codegen_flags: <defaults>
</compile_context>

<pallas_src>
import functools

import jax
import jax.numpy as jnp
from jax.experimental import pallas as pl
from jax.experimental.pallas import tpu as pltpu

_SQRT2_INV = 0.7071067811865476
_BN_EPS = 1e-5
_H1 = 512        # grade_predictor hidden 1
_H2 = 256        # grade_predictor hidden 2
_HO = 256        # ordinal_encoder hidden
_OUT_PAD = 128   # lane-padded fused output width (logits + thresholds + pad)


def _round_up(n, m):
    return ((n + m - 1) // m) * m


def _gelu_exact(x):
    # torch.nn.GELU() default = exact (erf) formulation.
    return 0.5 * x * (1.0 + jax.lax.erf(x * _SQRT2_INV))


def _head_kernel(x_ref, wf1_ref, bf1_ref, w2_ref, b2_ref, w3h_ref, w3o_ref,
                 bf3_ref, out_ref, *, act_dtype):
    cdt = wf1_ref.dtype                                   # compute dtype (f32 or bf16)
    x = x_ref[...].astype(cdt)                            # cast in-kernel (no HBM pre-pass)

    # Fused first layer: [grade L1 (BN-folded) | ordinal L1] -> (tb, 768), f32 acc.
    y = jnp.dot(x, wf1_ref[...], preferred_element_type=jnp.float32) + bf1_ref[...]
    y = _gelu_exact(y.astype(act_dtype))                  # GELU applies to both branches
    h = y[:, :_H1].astype(cdt)                            # grade branch hidden 1
    o = y[:, _H1:].astype(cdt)                            # ordinal branch hidden

    # Second grade layer (BN folded into W2/b2); Dropout = identity (eval).
    h = jnp.dot(h, w2_ref[...], preferred_element_type=jnp.float32) + b2_ref[...]
    h = _gelu_exact(h.astype(act_dtype)).astype(cdt)      # (tb, 256)

    # Fused final layer as two K=256 matmuls into the 128-lane slab
    # (lanes [0, G) = logits, lanes [G, 2G-1) = ordinal thresholds, rest zero).
    out = (jnp.dot(h, w3h_ref[...], preferred_element_type=jnp.float32)
           + jnp.dot(o, w3o_ref[...], preferred_element_type=jnp.float32)
           + bf3_ref[...])
    out_ref[...] = out.astype(out_ref.dtype)


def prepare_params(params, num_grades=5, compute_dtype=jnp.float32):
    """One-time (cacheable) parameter preprocessing: fold eval-mode BN into the
    linear weights and fuse/split the branch weights.  Biases stay f32."""
    assert 2 * num_grades - 1 <= _OUT_PAD, "num_grades too large for fused 128-lane layout"

    s1 = params["g1"] * jax.lax.rsqrt(params["v1"] + _BN_EPS)
    w1 = params["w1"] * s1[None, :]
    b1 = (params["b1"] - params["m1"]) * s1 + params["be1"]
    s2 = params["g2"] * jax.lax.rsqrt(params["v2"] + _BN_EPS)
    w2 = params["w2"] * s2[None, :]
    b2 = (params["b2"] - params["m2"]) * s2 + params["be2"]

    # Fused first layer weight: (fd, 512 + 256)
    wf1 = jnp.concatenate([w1, params["wo1"]], axis=1)
    bf1 = jnp.concatenate([b1, params["bo1"]], axis=0).reshape(1, -1)

    # Final layer split into two (256, 128) mats (avoids in-kernel concat).
    w3h = jnp.zeros((_H2, _OUT_PAD), jnp.float32).at[:, :num_grades].set(params["w3"])
    w3o = jnp.zeros((_HO, _OUT_PAD), jnp.float32).at[:, num_grades:2 * num_grades - 1].set(
        params["wo2"])
    bf3 = jnp.zeros((_OUT_PAD,), jnp.float32)
    bf3 = bf3.at[:num_grades].set(params["b3"])
    bf3 = bf3.at[num_grades:2 * num_grades - 1].set(params["bo2"])

    return {
        "wf1": wf1.astype(compute_dtype),
        "bf1": bf1.astype(jnp.float32),
        "w2": w2.astype(compute_dtype),
        "b2": b2.reshape(1, -1).astype(jnp.float32),
        "w3h": w3h.astype(compute_dtype),
        "w3o": w3o.astype(compute_dtype),
        "bf3": bf3.reshape(1, -1).astype(jnp.float32),
    }


def _generation_config():
    """(default batch tile, vmem_limit_bytes, keep grid >= 2) per TPU generation."""
    try:
        vmem_cap = pltpu.get_tpu_info().vmem_capacity_bytes
    except Exception:
        vmem_cap = 64 * 1024 * 1024                       # unknown -> conservative
    if vmem_cap >= 96 * 1024 * 1024:
        # v5e / v6e: 128 MiB VMEM, single TensorCore -> big tiles, generous limit.
        return 512, 100 * 1024 * 1024, False
    # v7x: 64 MiB per-TC VMEM, 2 TensorCores -> moderate tiles, grid >= 2.
    return 384, 52 * 1024 * 1024, True


def grade_consistency_head(x, prep, num_grades=5, block_b=None, gelu_dtype=None):
    """x: (B, feature_dim) -> (logits (B, num_grades), thresholds (B, num_grades-1)).

    gelu_dtype: dtype used for the GELU VALU work.  Default f32 (matches PyTorch
    precision everywhere); pass jnp.bfloat16 on v6e/v7x (bf16 VPU) with bf16
    weights to halve GELU vector-ALU work.
    """
    B, fd = x.shape
    cdt = prep["wf1"].dtype
    act_dtype = gelu_dtype if gelu_dtype is not None else jnp.float32
    out_dtype = cdt                                       # bf16 path -> bf16 writeback

    default_tb, vmem_limit, want_grid2 = _generation_config()
    if block_b is None:
        block_b = default_tb

    sub = 16                                              # safe sublane granularity (f32 & bf16)
    tb = max(sub, min(_round_up(block_b, sub), _round_up(B, sub)))
    if want_grid2:
        # Keep >= 2 grid steps so ("parallel",) shards across v7x's two TCs.
        tb = max(sub, min(tb, _round_up(pl.cdiv(B, 2), sub)))
    grid = pl.cdiv(B, tb)                                 # ragged last tile masked by Pallas

    def resident(arr):
        # Same block every grid step -> DMA'd once, VMEM-resident; Buffered(1)
        # avoids wasting a second pipeline buffer on constant-index weights.
        return pl.BlockSpec(arr.shape, lambda i: (0, 0),
                            pipeline_mode=pl.Buffered(1))

    kernel = functools.partial(_head_kernel, act_dtype=act_dtype)

    out = pl.pallas_call(
        kernel,
        out_shape=jax.ShapeDtypeStruct((B, _OUT_PAD), out_dtype),
        grid_spec=pltpu.PrefetchScalarGridSpec(
            num_scalar_prefetch=0,
            grid=(grid,),
            in_specs=[
                pl.BlockSpec((tb, fd), lambda i: (i, 0)),     # x tile (pipelined)
                resident(prep["wf1"]),
                resident(prep["bf1"]),
                resident(prep["w2"]),
                resident(prep["b2"]),
                resident(prep["w3h"]),
                resident(prep["w3o"]),
                resident(prep["bf3"]),
            ],
            out_specs=pl.BlockSpec((tb, _OUT_PAD), lambda i: (i, 0)),
        ),
        compiler_params=pltpu.CompilerParams(
            dimension_semantics=("parallel",),                # megacore-shard batch tiles
            vmem_limit_bytes=vmem_limit,
        ),
    )(x, prep["wf1"], prep["bf1"], prep["w2"], prep["b2"],
      prep["w3h"], prep["w3o"], prep["bf3"])

    logits = out[:, :num_grades].astype(jnp.float32)
    thresholds = out[:, num_grades:2 * num_grades - 1].astype(jnp.float32)
    return logits, thresholds


def init_params(key, feature_dim, num_grades=5):
    """Deterministic synthetic parameters (PyTorch-like uniform(-1/sqrt(fan_in), ...))."""
    ks = jax.random.split(key, 16)

    def lin(kw, kb, fan_in, fan_out):
        bound = 1.0 / (fan_in ** 0.5)
        w = jax.random.uniform(kw, (fan_in, fan_out), jnp.float32, -bound, bound)
        b = jax.random.uniform(kb, (fan_out,), jnp.float32, -bound, bound)
        return w, b

    p = {}
    p["w1"], p["b1"] = lin(ks[0], ks[1], feature_dim, _H1)
    p["w2"], p["b2"] = lin(ks[2], ks[3], _H1, _H2)
    p["w3"], p["b3"] = lin(ks[4], ks[5], _H2, num_grades)
    p["wo1"], p["bo1"] = lin(ks[6], ks[7], feature_dim, _HO)
    p["wo2"], p["bo2"] = lin(ks[8], ks[9], _HO, num_grades - 1)
    # BatchNorm affine + (non-trivial) running stats, eval mode.
    p["g1"] = 1.0 + 0.1 * jax.random.normal(ks[10], (_H1,), jnp.float32)
    p["be1"] = 0.1 * jax.random.normal(ks[11], (_H1,), jnp.float32)
    p["m1"] = 0.05 * jax.random.normal(ks[12], (_H1,), jnp.float32)
    p["v1"] = 1.0 + 0.1 * jax.random.uniform(ks[13], (_H1,), jnp.float32)
    p["g2"] = 1.0 + 0.1 * jax.random.normal(ks[14], (_H2,), jnp.float32)
    p["be2"] = 0.1 * jax.random.normal(ks[15], (_H2,), jnp.float32)
    p["m2"] = jnp.zeros((_H2,), jnp.float32)
    p["v2"] = jnp.ones((_H2,), jnp.float32)
    return p


def _reference(x, p):
    def gelu(v):
        return 0.5 * v * (1.0 + jax.lax.erf(v * _SQRT2_INV))
    h = x @ p["w1"] + p["b1"]
    h = (h - p["m1"]) / jnp.sqrt(p["v1"] + _BN_EPS) * p["g1"] + p["be1"]
    h = gelu(h)
    h = h @ p["w2"] + p["b2"]
    h = (h - p["m2"]) / jnp.sqrt(p["v2"] + _BN_EPS) * p["g2"] + p["be2"]
    h = gelu(h)
    logits = h @ p["w3"] + p["b3"]
    o = gelu(x @ p["wo1"] + p["bo1"])
    ordinal = o @ p["wo2"] + p["bo2"]
    return logits, ordinal


if __name__ == "__main__":
    B, FEATURE_DIM, NUM_GRADES = 2, 32, 5
    key = jax.random.PRNGKey(0)
    kx, kp = jax.random.split(key)
    x = jax.random.normal(kx, (B, FEATURE_DIM), jnp.float32)
    params = init_params(kp, FEATURE_DIM, NUM_GRADES)
    ref_logits, ref_thr = _reference(x, params)

    # f32 path: tight tolerance vs reference.
    prep_f32 = prepare_params(params, NUM_GRADES, compute_dtype=jnp.float32)
    logits, thresholds = grade_consistency_head(x, prep_f32, NUM_GRADES)
    logits = jax.block_until_ready(logits)
    thresholds = jax.block_until_ready(thresholds)
    assert logits.shape == (B, NUM_GRADES)
    assert thresholds.shape == (B, NUM_GRADES - 1)
    assert jnp.allclose(logits, ref_logits, rtol=1e-3, atol=1e-3)
    assert jnp.allclose(thresholds, ref_thr, rtol=1e-3, atol=1e-3)

    # bf16 weights / activations / output (f32 MXU accumulation), bf16 GELU:
    # looser tolerance.
    prep_bf16 = prepare_params(params, NUM_GRADES, compute_dtype=jnp.bfloat16)
    logits16, thr16 = grade_consistency_head(x, prep_bf16, NUM_GRADES,
                                             gelu_dtype=jnp.bfloat16)
    logits16 = jax.block_until_ready(logits16)
    thr16 = jax.block_until_ready(thr16)
    assert jnp.allclose(logits16, ref_logits, rtol=5e-2, atol=5e-2)
    assert jnp.allclose(thr16, ref_thr, rtol=5e-2, atol=5e-2)

    print("KERNEL_OK")
</pallas_src>

<mosaic_0001>
module attributes {stable_mosaic.version = 11 : i64} {
  func.func @_head_kernel(%arg0: i32, %arg1: memref<16x32xf32, #tpu.memory_space<vmem>>, %arg2: memref<32x768xf32, #tpu.memory_space<vmem>>, %arg3: memref<1x768xf32, #tpu.memory_space<vmem>>, %arg4: memref<512x256xf32, #tpu.memory_space<vmem>>, %arg5: memref<1x256xf32, #tpu.memory_space<vmem>>, %arg6: memref<256x128xf32, #tpu.memory_space<vmem>>, %arg7: memref<256x128xf32, #tpu.memory_space<vmem>>, %arg8: memref<1x128xf32, #tpu.memory_space<vmem>>, %arg9: memref<16x128xf32, #tpu.memory_space<vmem>>) attributes {dimension_semantics = [#tpu.dimension_semantics<parallel>], iteration_bounds = array<i64: 1>, scalar_prefetch = 0 : i64, scratch_operands = 0 : i64, tpu.core_type = #tpu.core_type<tc>, window_params = [{transform_indices = @transform_0, window_bounds = array<i64: 16, 32>}, {pipeline_mode = #tpu.pipeline_mode<synchronous>, transform_indices = @transform_1, window_bounds = array<i64: 32, 768>}, {pipeline_mode = #tpu.pipeline_mode<synchronous>, transform_indices = @transform_2, window_bounds = array<i64: 1, 768>}, {pipeline_mode = #tpu.pipeline_mode<synchronous>, transform_indices = @transform_3, window_bounds = array<i64: 512, 256>}, {pipeline_mode = #tpu.pipeline_mode<synchronous>, transform_indices = @transform_4, window_bounds = array<i64: 1, 256>}, {pipeline_mode = #tpu.pipeline_mode<synchronous>, transform_indices = @transform_5, window_bounds = array<i64: 256, 128>}, {pipeline_mode = #tpu.pipeline_mode<synchronous>, transform_indices = @transform_6, window_bounds = array<i64: 256, 128>}, {pipeline_mode = #tpu.pipeline_mode<synchronous>, transform_indices = @transform_7, window_bounds = array<i64: 1, 128>}, {transform_indices = @transform_8, window_bounds = array<i64: 16, 128>}]} {
    %c0 = arith.constant 0 : index
    %c0_0 = arith.constant 0 : index
    %0 = vector.load %arg1[%c0, %c0_0] : memref<16x32xf32, #tpu.memory_space<vmem>>, vector<16x32xf32>
    %c0_1 = arith.constant 0 : index
    %c0_2 = arith.constant 0 : index
    %1 = vector.load %arg2[%c0_1, %c0_2] : memref<32x768xf32, #tpu.memory_space<vmem>>, vector<32x768xf32>
    %cst = arith.constant dense<0.000000e+00> : vector<16x768xf32>
    %2 = tpu.matmul %0, %1, %cst {dimension_numbers = #tpu.dot_dimension_numbers<[1], [0], [0], [1], [0, 0, 1, 1], [], []>} : vector<16x32xf32>, vector<32x768xf32>, vector<16x768xf32> -> vector<16x768xf32>
    %c0_3 = arith.constant 0 : index
    %c0_4 = arith.constant 0 : index
    %3 = vector.load %arg3[%c0_3, %c0_4] : memref<1x768xf32, #tpu.memory_space<vmem>>, vector<1x768xf32>
    %4 = vector.broadcast %3 : vector<1x768xf32> to vector<16x768xf32>
    %5 = arith.addf %2, %4 : vector<16x768xf32>
    %cst_5 = arith.constant 5.000000e-01 : f32
    %6 = vector.broadcast %cst_5 : f32 to vector<16x768xf32>
    %7 = arith.mulf %6, %5 : vector<16x768xf32>
    %cst_6 = arith.constant 0.707106769 : f32
    %8 = vector.broadcast %cst_6 : f32 to vector<16x768xf32>
    %9 = arith.mulf %5, %8 : vector<16x768xf32>
    %10 = math.erf %9 : vector<16x768xf32>
    %cst_7 = arith.constant 1.000000e+00 : f32
    %11 = vector.broadcast %cst_7 : f32 to vector<16x768xf32>
    %12 = arith.addf %11, %10 : vector<16x768xf32>
    %13 = arith.mulf %7, %12 : vector<16x768xf32>
    %14 = vector.extract_strided_slice %13 {offsets = [0, 0], sizes = [16, 512], strides = [1, 1]} : vector<16x768xf32> to vector<16x512xf32>
    %15 = vector.extract_strided_slice %13 {offsets = [0, 512], sizes = [16, 256], strides = [1, 1]} : vector<16x768xf32> to vector<16x256xf32>
    %c0_8 = arith.constant 0 : index
    %c0_9 = arith.constant 0 : index
    %16 = vector.load %arg4[%c0_8, %c0_9] : memref<512x256xf32, #tpu.memory_space<vmem>>, vector<512x256xf32>
    %cst_10 = arith.constant dense<0.000000e+00> : vector<16x256xf32>
    %17 = tpu.matmul %14, %16, %cst_10 {dimension_numbers = #tpu.dot_dimension_numbers<[1], [0], [0], [1], [0, 0, 1, 1], [], []>} : vector<16x512xf32>, vector<512x256xf32>, vector<16x256xf32> -> vector<16x256xf32>
    %c0_11 = arith.constant 0 : index
    %c0_12 = arith.constant 0 : index
    %18 = vector.load %arg5[%c0_11, %c0_12] : memref<1x256xf32, #tpu.memory_space<vmem>>, vector<1x256xf32>
    %19 = vector.broadcast %18 : vector<1x256xf32> to vector<16x256xf32>
    %20 = arith.addf %17, %19 : vector<16x256xf32>
    %cst_13 = arith.constant 5.000000e-01 : f32
    %21 = vector.broadcast %cst_13 : f32 to vector<16x256xf32>
    %22 = arith.mulf %21, %20 : vector<16x256xf32>
    %cst_14 = arith.constant 0.707106769 : f32
    %23 = vector.broadcast %cst_14 : f32 to vector<16x256xf32>
    %24 = arith.mulf %20, %23 : vector<16x256xf32>
    %25 = math.erf %24 : vector<16x256xf32>
    %cst_15 = arith.constant 1.000000e+00 : f32
    %26 = vector.broadcast %cst_15 : f32 to vector<16x256xf32>
    %27 = arith.addf %26, %25 : vector<16x256xf32>
    %28 = arith.mulf %22, %27 : vector<16x256xf32>
    %c0_16 = arith.constant 0 : index
    %c0_17 = arith.constant 0 : index
    %29 = vector.load %arg6[%c0_16, %c0_17] : memref<256x128xf32, #tpu.memory_space<vmem>>, vector<256x128xf32>
    %cst_18 = arith.constant dense<0.000000e+00> : vector<16x128xf32>
    %30 = tpu.matmul %28, %29, %cst_18 {dimension_numbers = #tpu.dot_dimension_numbers<[1], [0], [0], [1], [0, 0, 1, 1], [], []>} : vector<16x256xf32>, vector<256x128xf32>, vector<16x128xf32> -> vector<16x128xf32>
    %c0_19 = arith.constant 0 : index
    %c0_20 = arith.constant 0 : index
    %31 = vector.load %arg7[%c0_19, %c0_20] : memref<256x128xf32, #tpu.memory_space<vmem>>, vector<256x128xf32>
    %cst_21 = arith.constant dense<0.000000e+00> : vector<16x128xf32>
    %32 = tpu.matmul %15, %31, %cst_21 {dimension_numbers = #tpu.dot_dimension_numbers<[1], [0], [0], [1], [0, 0, 1, 1], [], []>} : vector<16x256xf32>, vector<256x128xf32>, vector<16x128xf32> -> vector<16x128xf32>
    %33 = arith.addf %30, %32 : vector<16x128xf32>
    %c0_22 = arith.constant 0 : index
    %c0_23 = arith.constant 0 : index
    %34 = vector.load %arg8[%c0_22, %c0_23] : memref<1x128xf32, #tpu.memory_space<vmem>>, vector<1x128xf32>
    %35 = vector.broadcast %34 : vector<1x128xf32> to vector<16x128xf32>
    %36 = arith.addf %33, %35 : vector<16x128xf32>
    %c0_24 = arith.constant 0 : index
    %c0_25 = arith.constant 0 : index
    %37 = vector.load %arg9[%c0_24, %c0_25] : memref<16x128xf32, #tpu.memory_space<vmem>>, vector<16x128xf32>
    tpu.vector_store %arg9[%c0_24, %c0_25], %36 {strides = array<i32>} : memref<16x128xf32, #tpu.memory_space<vmem>>, vector<16x128xf32>,
    return
  }
  func.func @transform_0(%arg0: i32) -> (i32, i32) {
    %c0_i32 = arith.constant 0 : i32
    %c0_i32_0 = arith.constant 0 : i32
    return %arg0, %c0_i32 : i32, i32
  }
  func.func @transform_1(%arg0: i32) -> (i32, i32) {
    %c0_i32 = arith.constant 0 : i32
    %c0_i32_0 = arith.constant 0 : i32
    %c0_i32_1 = arith.constant 0 : i32
    return %c0_i32, %c0_i32_0 : i32, i32
  }
  func.func @transform_2(%arg0: i32) -> (i32, i32) {
    %c0_i32 = arith.constant 0 : i32
    %c0_i32_0 = arith.constant 0 : i32
    %c0_i32_1 = arith.constant 0 : i32
    return %c0_i32, %c0_i32_0 : i32, i32
  }
  func.func @transform_3(%arg0: i32) -> (i32, i32) {
    %c0_i32 = arith.constant 0 : i32
    %c0_i32_0 = arith.constant 0 : i32
    %c0_i32_1 = arith.constant 0 : i32
    return %c0_i32, %c0_i32_0 : i32, i32
  }
  func.func @transform_4(%arg0: i32) -> (i32, i32) {
    %c0_i32 = arith.constant 0 : i32
    %c0_i32_0 = arith.constant 0 : i32
    %c0_i32_1 = arith.constant 0 : i32
    return %c0_i32, %c0_i32_0 : i32, i32
  }
  func.func @transform_5(%arg0: i32) -> (i32, i32) {
    %c0_i32 = arith.constant 0 : i32
    %c0_i32_0 = arith.constant 0 : i32
    %c0_i32_1 = arith.constant 0 : i32
    return %c0_i32, %c0_i32_0 : i32, i32
  }
  func.func @transform_6(%arg0: i32) -> (i32, i32) {
    %c0_i32 = arith.constant 0 : i32
    %c0_i32_0 = arith.constant 0 : i32
    %c0_i32_1 = arith.constant 0 : i32
    return %c0_i32, %c0_i32_0 : i32, i32
  }
  func.func @transform_7(%arg0: i32) -> (i32, i32) {
    %c0_i32 = arith.constant 0 : i32
    %c0_i32_0 = arith.constant 0 : i32
    %c0_i32_1 = arith.constant 0 : i32
    return %c0_i32, %c0_i32_0 : i32, i32
  }
  func.func @transform_8(%arg0: i32) -> (i32, i32) {
    %c0_i32 = arith.constant 0 : i32
    %c0_i32_0 = arith.constant 0 : i32
    return %arg0, %c0_i32 : i32, i32
  }
}

</mosaic_0001>

<llo_original>
// kernel: tpu_custom_call.1
$region0: #{tpu_custom_call.1}
  #allocation0 [shape = 'u32[]', space=smem, size = 0x4, offset = 0x4, fixed_abs, tag = 'smem constant byte address 0x4 - core index']
  #allocation1 [shape = 'u32[72,128]{1,0:T(1,128)}', space=vmem, size = 0x9000, scoped, tag = 'internal scratch']
  %s0 = inlined_call_operand.hbm [shape: f32[2,32], index: 0, kind: input, shape index: {}]
  %s1 = inlined_call_operand.hbm [shape: f32[32,768], index: 1, kind: input, shape index: {}]
  %s2 = inlined_call_operand.hbm [shape: f32[1,768], index: 2, kind: input, shape index: {}]
  %s3 = inlined_call_operand.hbm [shape: f32[512,256], index: 3, kind: input, shape index: {}]
  %s4 = inlined_call_operand.vmem [shape: f32[1,256], index: 4, kind: input, shape index: {}]
  %s5 = inlined_call_operand.hbm [shape: f32[256,128], index: 5, kind: input, shape index: {}]
  %s6 = inlined_call_operand.hbm [shape: f32[256,128], index: 6, kind: input, shape index: {}]
  %s7 = inlined_call_operand.vmem [shape: f32[1,128], index: 7, kind: input, shape index: {}]
  %s8 = inlined_call_operand.hbm [shape: f32[2,128], index: 8, kind: output, shape index: {}]
  %s9 = sld [smem:[#allocation0]]
  $region66: #{tpu_custom_call.1} parent=0
    _
  %s11 = ssub.s32 1, %s9
  %s12 = scalar_select 0, %s11, %s9
  $region1: #{tpu_custom_call.1} parent=0
    #allocation2 [shape = 'u8[8192]{0}', space=vmem, size = 0x2000, scoped, tag = 'input window, operand 0, single buffered']
    #allocation3 [shape = 's32[1]{0}', space=sflag, size = 0x4, scoped, tag = 'scoped memory for tpu_custom_call.1']
    #allocation4 [shape = 's32[1]{0}', space=sflag, size = 0x4, scoped, tag = 'scoped memory for tpu_custom_call.1']
    #allocation5 [shape = 'u8[98304]{0}', space=vmem, size = 0x18000, scoped, tag = 'input window, operand 1, single buffered']
    #allocation6 [shape = 's32[1]{0}', space=sflag, size = 0x4, scoped, tag = 'scoped memory for tpu_custom_call.1']
    #allocation7 [shape = 'u8[3072]{0}', space=vmem, size = 0xc00, scoped, tag = 'input window, operand 2, single buffered']
    #allocation8 [shape = 'u8[524288]{0}', space=vmem, size = 0x80000, scoped, tag = 'input window, operand 3, single buffered']
    #allocation9 [shape = 's32[1]{0}', space=sflag, size = 0x4, scoped, tag = 'scoped memory for tpu_custom_call.1']
    #allocation10 [shape = 'u8[131072]{0}', space=vmem, size = 0x20000, scoped, tag = 'input window, operand 5, single buffered']
    #allocation11 [shape = 'u8[131072]{0}', space=vmem, size = 0x20000, scoped, tag = 'input window, operand 6, single buffered']
    #allocation12 [shape = 's32[1]{0}', space=sflag, size = 0x4, scoped, tag = 'scoped memory for tpu_custom_call.1']
    #allocation13 [shape = 'u8[8192]{0}', space=vmem, size = 0x2000, scoped, tag = 'output window, operand 0, single buffered']
    %13 = vsyncpa [#allocation3], 0
    %14 = vsyncpa [#allocation6], 0
    %15 = vsyncpa [#allocation9], 0
    %16 = vsyncpa [#allocation12], 0
    %17 = vsyncpa [#allocation4], 0
    // Predicated region
    $region2: #{tpu_custom_call.1} parent=1 // pred_check
      _
    $region3: #{tpu_custom_call.1} parent=1 // pred_check_branch
      %19 = sbr.rel (0) target = $region5
    $region4: #{tpu_custom_call.1} parent=1 // pred_region
      %21 = vsyncadd [#allocation3], 224
      %s22 = sshll.u32 %s0, 4
      %s23 = int_to_ptr.hbm [resolvable:$true] %s22
      %s24 = sshll.u32 [#allocation2], 4
      %s25 = int_to_ptr.vmem [resolvable:$true] %s24
      %30 = dma.hbm_to_vmem [thread:$0]  %s23, 32, %s25, [#allocation3], 32, 32, 2
    $region5: #{tpu_custom_call.1} parent=1 // pred_fallthru
      _
    // Predicated region
    $region6: #{tpu_custom_call.1} parent=1 // pred_check
      _
    $region7: #{tpu_custom_call.1} parent=1 // pred_check_branch
      %32 = sbr.rel (0) target = $region9
    $region8: #{tpu_custom_call.1} parent=1 // pred_region
      %34 = vsyncadd [#allocation6], 0
      %s35 = sshll.u32 %s1, 4
      %s36 = int_to_ptr.hbm [resolvable:$true] %s35
      %s37 = sshll.u32 [#allocation5], 4
      %s38 = int_to_ptr.vmem [resolvable:$true] %s37
      %43 = dma.hbm_to_vmem [thread:$0]  %s36, 3072, %s38, [#allocation6], 768, 768, 48
    $region9: #{tpu_custom_call.1} parent=1 // pred_fallthru
      _
    // Predicated region
    $region10: #{tpu_custom_call.1} parent=1 // pred_check
      _
    $region11: #{tpu_custom_call.1} parent=1 // pred_check_branch
      %45 = sbr.rel (0) target = $region13
    $region12: #{tpu_custom_call.1} parent=1 // pred_region
      %47 = vsyncadd [#allocation6], 0
      %s49 = sshll.u32 %s2, 4
      %s50 = int_to_ptr.hbm [resolvable:$true] %s49
      %s51 = sshll.u32 [#allocation7], 4
      %s52 = int_to_ptr.vmem [resolvable:$true] %s51
      %54 = dma.hbm_to_vmem [thread:$0]  %s50, 96, %s52, [#allocation6]
    $region13: #{tpu_custom_call.1} parent=1 // pred_fallthru
      _
    // Predicated region
    $region14: #{tpu_custom_call.1} parent=1 // pred_check
      _
    $region15: #{tpu_custom_call.1} parent=1 // pred_check_branch
      %56 = sbr.rel (0) target = $region17
    $region16: #{tpu_custom_call.1} parent=1 // pred_region
      %58 = vsyncadd [#allocation9], 0
      %s59 = sshll.u32 %s3, 4
      %s60 = int_to_ptr.hbm [resolvable:$true] %s59
      %s61 = sshll.u32 [#allocation8], 4
      %s62 = int_to_ptr.vmem [resolvable:$true] %s61
      %67 = dma.hbm_to_vmem [thread:$0]  %s60, 16384, %s62, [#allocation9], 256, 256, 16
    $region17: #{tpu_custom_call.1} parent=1 // pred_fallthru
      _
    // Predicated region
    $region18: #{tpu_custom_call.1} parent=1 // pred_check
      _
    $region19: #{tpu_custom_call.1} parent=1 // pred_check_branch
      %69 = sbr.rel (0) target = $region21
    $region20: #{tpu_custom_call.1} parent=1 // pred_region
      _
    $region21: #{tpu_custom_call.1} parent=1 // pred_fallthru
      _
    // Predicated region
    $region22: #{tpu_custom_call.1} parent=1 // pred_check
      _
    $region23: #{tpu_custom_call.1} parent=1 // pred_check_branch
      %71 = sbr.rel (0) target = $region25
    $region24: #{tpu_custom_call.1} parent=1 // pred_region
      %73 = vsyncadd [#allocation9], 0
      %s74 = sshll.u32 %s5, 4
      %s75 = int_to_ptr.hbm [resolvable:$true] %s74
      %s76 = sshll.u32 [#allocation10], 4
      %s77 = int_to_ptr.vmem [resolvable:$true] %s76
      %82 = dma.hbm_to_vmem [thread:$0]  %s75, 4096, %s77, [#allocation9], 128, 128, 8
    $region25: #{tpu_custom_call.1} parent=1 // pred_fallthru
      _
    // Predicated region
    $region26: #{tpu_custom_call.1} parent=1 // pred_check
      _
    $region27: #{tpu_custom_call.1} parent=1 // pred_check_branch
      %84 = sbr.rel (0) target = $region29
    $region28: #{tpu_custom_call.1} parent=1 // pred_region
      %86 = vsyncadd [#allocation12], 0
      %s87 = sshll.u32 %s6, 4
      %s88 = int_to_ptr.hbm [resolvable:$true] %s87
      %s89 = sshll.u32 [#allocation11], 4
      %s90 = int_to_ptr.vmem [resolvable:$true] %s89
      %95 = dma.hbm_to_vmem [thread:$0]  %s88, 4096, %s90, [#allocation12], 128, 128, 8
    $region29: #{tpu_custom_call.1} parent=1 // pred_fallthru
      _
    // Predicated region
    $region30: #{tpu_custom_call.1} parent=1 // pred_check
      _
    $region31: #{tpu_custom_call.1} parent=1 // pred_check_branch
      %97 = sbr.rel (0) target = $region33
    $region32: #{tpu_custom_call.1} parent=1 // pred_region
      _
    $region33: #{tpu_custom_call.1} parent=1 // pred_fallthru
      _
    // Predicated region
    $region34: #{tpu_custom_call.1} parent=1 // pred_check
      _
    $region35: #{tpu_custom_call.1} parent=1 // pred_check_branch
      %99 = sbr.rel (0) target = $region37
    $region36: #{tpu_custom_call.1} parent=1 // pred_region
      %101 = dma.done [#allocation3], 256
    $region37: #{tpu_custom_call.1} parent=1 // pred_fallthru
      _
    // Predicated region
    $region38: #{tpu_custom_call.1} parent=1 // pred_check
      _
    $region39: #{tpu_custom_call.1} parent=1 // pred_check_branch
      %103 = sbr.rel (0) target = $region41
    $region40: #{tpu_custom_call.1} parent=1 // pred_region
      %105 = dma.done [#allocation6], 3072
    $region41: #{tpu_custom_call.1} parent=1 // pred_fallthru
      _
    // Predicated region
    $region42: #{tpu_custom_call.1} parent=1 // pred_check
      _
    $region43: #{tpu_custom_call.1} parent=1 // pred_check_branch
      %107 = sbr.rel (0) target = $region45
    $region44: #{tpu_custom_call.1} parent=1 // pred_region
      %109 = dma.done [#allocation6], 96
    $region45: #{tpu_custom_call.1} parent=1 // pred_fallthru
      _
    // Predicated region
    $region46: #{tpu_custom_call.1} parent=1 // pred_check
      _
    $region47: #{tpu_custom_call.1} parent=1 // pred_check_branch
      %111 = sbr.rel (0) target = $region49
    $region48: #{tpu_custom_call.1} parent=1 // pred_region
      %113 = dma.done [#allocation9], 16384
    $region49: #{tpu_custom_call.1} parent=1 // pred_fallthru
      _
    // Predicated region
    $region50: #{tpu_custom_call.1} parent=1 // pred_check
      _
    $region51: #{tpu_custom_call.1} parent=1 // pred_check_branch
      %115 = sbr.rel (0) target = $region53
    $region52: #{tpu_custom_call.1} parent=1 // pred_region
      %117 = dma.done [#allocation9], 4096
    $region53: #{tpu_custom_call.1} parent=1 // pred_fallthru
      _
    // Predicated region
    $region54: #{tpu_custom_call.1} parent=1 // pred_check
      _
    $region55: #{tpu_custom_call.1} parent=1 // pred_check_branch
      %119 = sbr.rel (0) target = $region57
    $region56: #{tpu_custom_call.1} parent=1 // pred_region
      %121 = dma.done [#allocation12], 4096
    $region57: #{tpu_custom_call.1} parent=1 // pred_fallthru
      _
    %v122 = vld [vmem:[#allocation2] sm:$0xff]
    %v123 = vld [vmem:[#allocation2 + $0x8] sm:$0xff]
    %v124 = vld [vmem:[#allocation5] sm:$0xff]
    %v125 = vld [vmem:[#allocation5 + $0x8] sm:$0xff]
    %v126 = vld [vmem:[#allocation5 + $0x10] sm:$0xff]
    %v127 = vld [vmem:[#allocation5 + $0x18] sm:$0xff]
    %v128 = vld [vmem:[#allocation5 + $0x20] sm:$0xff]
    %v129 = vld [vmem:[#allocation5 + $0x28] sm:$0xff]
    %v130 = vld [vmem:[#allocation5 + $0x30] sm:$0xff]
    %v131 = vld [vmem:[#allocation5 + $0x38] sm:$0xff]
    %v132 = vld [vmem:[#allocation5 + $0x40] sm:$0xff]
    %v133 = vld [vmem:[#allocation5 + $0x48] sm:$0xff]
    %v134 = vld [vmem:[#allocation5 + $0x50] sm:$0xff]
    %v135 = vld [vmem:[#allocation5 + $0x58] sm:$0xff]
    %v136 = vld [vmem:[#allocation5 + $0x60] sm:$0xff]
    %v137 = vld [vmem:[#allocation5 + $0x68] sm:$0xff]
    %v138 = vld [vmem:[#allocation5 + $0x70] sm:$0xff]
    %v139 = vld [vmem:[#allocation5 + $0x78] sm:$0xff]
    %v140 = vld [vmem:[#allocation5 + $0x80] sm:$0xff]
    %v141 = vld [vmem:[#allocation5 + $0x88] sm:$0xff]
    %v142 = vld [vmem:[#allocation5 + $0x90] sm:$0xff]
    %v143 = vld [vmem:[#allocation5 + $0x98] sm:$0xff]
    %v144 = vld [vmem:[#allocation5 + $0xa0] sm:$0xff]
    %v145 = vld [vmem:[#allocation5 + $0xa8] sm:$0xff]
    %v146 = vld [vmem:[#allocation5 + $0xb0] sm:$0xff]
    %v147 = vld [vmem:[#allocation5 + $0xb8] sm:$0xff]
    %v148 = vld [vmem:[#allocation7] sm:$0x3f]
    %v150 = vperm.slane %v148, 0
    %v151 = vperm.slane %v148, 1
    %v152 = vperm.slane %v148, 2
    %v153 = vperm.slane %v148, 3
    %v154 = vperm.slane %v148, 4
    %v155 = vperm.slane %v148, 5
    %vm162 = vcmask 261120
    %v164 = vsel %vm162, %v122, 0
    %v167 = vsel %vm162, %v123, 0
    %169 = vmatpush.msra.mxu0 0.0
    %170 = vmatpush.msra.mxu0 0.0
    %171 = vmatpush.msra.mxu0 0.0
    %172 = vmatpush.msra.mxu0 0.0
    %173 = vmatpush.msra.mxu0 0.0
    %174 = vmatpush.msra.mxu0 0.0
    %175 = vmatpush.msra.mxu0 0.0
    %176 = vmatpush.msra.mxu0 0.0
    %177 = vmatpush.msra.mxu0 0.0
    %178 = vmatpush.msra.mxu0 0.0
    %179 = vmatpush.msra.mxu0 0.0
    %180 = vmatpush.msra.mxu0 0.0
    %181 = vmatpush.msra.mxu0 %v142
    %182 = vmatpush.msra.mxu0 %v136
    %183 = vmatpush.msra.mxu0 %v130
    %184 = vmatpush.msra.mxu0 %v124
    %185 = vmatmul.f32.gmra.mxu0 %v164
    %v186 = vpop.f32.mrf.mxu0
    %v187 = vadd.f32 %v150, %v186
    %188 = vmatmul.f32.gmra.mxu0 %v167
    %v189 = vpop.f32.mrf.mxu0
    %v190 = vadd.f32 %v150, %v189
    %191 = vdwg.mxu0
    %192 = vmatpush.msra.mxu0 0.0
    %193 = vmatpush.msra.mxu0 0.0
    %194 = vmatpush.msra.mxu0 0.0
    %195 = vmatpush.msra.mxu0 0.0
    %196 = vmatpush.msra.mxu0 0.0
    %197 = vmatpush.msra.mxu0 0.0
    %198 = vmatpush.msra.mxu0 0.0
    %199 = vmatpush.msra.mxu0 0.0
    %200 = vmatpush.msra.mxu0 0.0
    %201 = vmatpush.msra.mxu0 0.0
    %202 = vmatpush.msra.mxu0 0.0
    %203 = vmatpush.msra.mxu0 0.0
    %204 = vmatpush.msra.mxu0 %v143
    %205 = vmatpush.msra.mxu0 %v137
    %206 = vmatpush.msra.mxu0 %v131
    %207 = vmatpush.msra.mxu0 %v125
    %208 = vmatmul.f32.gmra.mxu0 %v164
    %v209 = vpop.f32.mrf.mxu0
    %v210 = vadd.f32 %v151, %v209
    %211 = vmatmul.f32.gmra.mxu0 %v167
    %v212 = vpop.f32.mrf.mxu0
    %v213 = vadd.f32 %v151, %v212
    %214 = vdwg.mxu0
    %215 = vmatpush.msra.mxu0 0.0
    %216 = vmatpush.msra.mxu0 0.0
    %217 = vmatpush.msra.mxu0 0.0
    %218 = vmatpush.msra.mxu0 0.0
    %219 = vmatpush.msra.mxu0 0.0
    %220 = vmatpush.msra.mxu0 0.0
    %221 = vmatpush.msra.mxu0 0.0
    %222 = vmatpush.msra.mxu0 0.0
    %223 = vmatpush.msra.mxu0 0.0
    %224 = vmatpush.msra.mxu0 0.0
    %225 = vmatpush.msra.mxu0 0.0
    %226 = vmatpush.msra.mxu0 0.0
    %227 = vmatpush.msra.mxu0 %v144
    %228 = vmatpush.msra.mxu0 %v138
    %229 = vmatpush.msra.mxu0 %v132
    %230 = vmatpush.msra.mxu0 %v126
    %231 = vmatmul.f32.gmra.mxu0 %v164
    %v232 = vpop.f32.mrf.mxu0
    %v233 = vadd.f32 %v152, %v232
    %234 = vmatmul.f32.gmra.mxu0 %v167
    %v235 = vpop.f32.mrf.mxu0
    %v236 = vadd.f32 %v152, %v235
    %237 = vdwg.mxu0
    %238 = vmatpush.msra.mxu0 0.0
    %239 = vmatpush.msra.mxu0 0.0
    %240 = vmatpush.msra.mxu0 0.0
    %241 = vmatpush.msra.mxu0 0.0
    %242 = vmatpush.msra.mxu0 0.0
    %243 = vmatpush.msra.mxu0 0.0
    %244 = vmatpush.msra.mxu0 0.0
    %245 = vmatpush.msra.mxu0 0.0
    %246 = vmatpush.msra.mxu0 0.0
    %247 = vmatpush.msra.mxu0 0.0
    %248 = vmatpush.msra.mxu0 0.0
    %249 = vmatpush.msra.mxu0 0.0
    %250 = vmatpush.msra.mxu0 %v145
    %251 = vmatpush.msra.mxu0 %v139
    %252 = vmatpush.msra.mxu0 %v133
    %253 = vmatpush.msra.mxu0 %v127
    %254 = vmatmul.f32.gmra.mxu0 %v164
    %v255 = vpop.f32.mrf.mxu0
    %v256 = vadd.f32 %v153, %v255
    %257 = vmatmul.f32.gmra.mxu0 %v167
    %v258 = vpop.f32.mrf.mxu0
    %v259 = vadd.f32 %v153, %v258
    %260 = vdwg.mxu0
    %261 = vmatpush.msra.mxu0 0.0
    %262 = vmatpush.msra.mxu0 0.0
    %263 = vmatpush.msra.mxu0 0.0
    %264 = vmatpush.msra.mxu0 0.0
    %265 = vmatpush.msra.mxu0 0.0
    %266 = vmatpush.msra.mxu0 0.0
    %267 = vmatpush.msra.mxu0 0.0
    %268 = vmatpush.msra.mxu0 0.0
    %269 = vmatpush.msra.mxu0 0.0
    %270 = vmatpush.msra.mxu0 0.0
    %271 = vmatpush.msra.mxu0 0.0
    %272 = vmatpush.msra.mxu0 0.0
    %273 = vmatpush.msra.mxu0 %v146
    %274 = vmatpush.msra.mxu0 %v140
    %275 = vmatpush.msra.mxu0 %v134
    %276 = vmatpush.msra.mxu0 %v128
    %277 = vmatmul.f32.gmra.mxu0 %v164
    %v278 = vpop.f32.mrf.mxu0
    %v279 = vadd.f32 %v154, %v278
    %280 = vmatmul.f32.gmra.mxu0 %v167
    %v281 = vpop.f32.mrf.mxu0
    %v282 = vadd.f32 %v154, %v281
    %283 = vdwg.mxu0
    %284 = vmatpush.msra.mxu0 0.0
    %285 = vmatpush.msra.mxu0 0.0
    %286 = vmatpush.msra.mxu0 0.0
    %287 = vmatpush.msra.mxu0 0.0
    %288 = vmatpush.msra.mxu0 0.0
    %289 = vmatpush.msra.mxu0 0.0
    %290 = vmatpush.msra.mxu0 0.0
    %291 = vmatpush.msra.mxu0 0.0
    %292 = vmatpush.msra.mxu0 0.0
    %293 = vmatpush.msra.mxu0 0.0
    %294 = vmatpush.msra.mxu0 0.0
    %295 = vmatpush.msra.mxu0 0.0
    %296 = vmatpush.msra.mxu0 %v147
    %297 = vmatpush.msra.mxu0 %v141
    %298 = vmatpush.msra.mxu0 %v135
    %299 = vmatpush.msra.mxu0 %v129
    %300 = vmatmul.f32.gmra.mxu0 %v164
    %v301 = vpop.f32.mrf.mxu0
    %v302 = vadd.f32 %v155, %v301
    %303 = vmatmul.f32.gmra.mxu0 %v167
    %v304 = vpop.f32.mrf.mxu0
    %v305 = vadd.f32 %v155, %v304
    %306 = vdwg.mxu0
    %v307 = vmul.f32 %v187, 0.5
    %v308 = vmul.f32 %v210, 0.5
    %v309 = vmul.f32 %v233, 0.5
    %v310 = vmul.f32 %v256, 0.5
    %v311 = vmul.f32 %v279, 0.5
    %v312 = vmul.f32 %v302, 0.5
    %v313 = vmul.f32 %v190, 0.5
    %v314 = vmul.f32 %v213, 0.5
    %v315 = vmul.f32 %v236, 0.5
    %v316 = vmul.f32 %v259, 0.5
    %v317 = vmul.f32 %v282, 0.5
    %v318 = vmul.f32 %v305, 0.5
    %v319 = vmul.f32 %v187, 0.70710677
    %v320 = vmul.f32 %v210, 0.70710677
    %v321 = vmul.f32 %v233, 0.70710677
    %v322 = vmul.f32 %v256, 0.70710677
    %v323 = vmul.f32 %v279, 0.70710677
    %v324 = vmul.f32 %v302, 0.70710677
    %v325 = vmul.f32 %v190, 0.70710677
    %v326 = vmul.f32 %v213, 0.70710677
    %v327 = vmul.f32 %v236, 0.70710677
    %v328 = vmul.f32 %v259, 0.70710677
    %v329 = vmul.f32 %v282, 0.70710677
    %v330 = vmul.f32 %v305, 0.70710677
    %v331 = vmul.f32 %v319, %v319
    %v332 = vmin.f32 16.0, %v331
    %v333 = vmul.f32 %v332, 2.1237322e-06
    %v334 = vadd.f32 %v333, 0.00028619796
    %v335 = vmul.f32 %v332, %v334
    %v336 = vadd.f32 %v335, 0.0036580483
    %v337 = vmul.f32 %v332, %v336
    %v338 = vadd.f32 %v337, 0.05243302
    %v339 = vmul.f32 %v332, %v338
    %v340 = vadd.f32 %v339, 0.18741608
    %v341 = vmul.f32 %v332, %v340
    %v342 = vadd.f32 %v341, 1.1283791
    %v343 = vmul.f32 %v319, %v342
    %v344 = vmul.f32 %v332, 3.8918573e-05
    %v345 = vadd.f32 %v344, 0.001143296
    %v346 = vmul.f32 %v332, %v345
    %v347 = vadd.f32 %v346, 0.014752088
    %v348 = vmul.f32 %v332, %v347
    %v349 = vadd.f32 %v348, 0.112945676
    %v350 = vmul.f32 %v332, %v349
    %v351 = vadd.f32 %v350, 0.4994258
    %v352 = vmul.f32 %v332, %v351
    %v353 = vadd.f32 %v352, 1.0
    %v354 = vrcp.pop %v353
    %v355 = vmul.f32 %v353, %v354
    %v356 = vsub.f32 1.0, %v355
    %v357 = vmul.f32 %v354, %v356
    %v358 = vadd.f32 %v354, %v357
    %vm359 = vweird.f32 %v353
    %vm360 = vweird.f32 %v354
    %vm361 = vmor %vm359, %vm360
    %v362 = vsel %vm361, %v354, %v358
    %v363 = vand.u32 2147483647, %v353
    %vm364 = vcmp.eq.f32.partialorder %v363, 8.507059e+37
    %v365 = vand.u32 %v353, 2147483648
    %v366 = vor.u32 1.1754944e-38, %v365
    %v367 = vsel %vm364, %v366, %v362
    %v368 = vmul.f32 %v343, %v367
    %v369 = vmin.f32 %v368, 1.0
    %v370 = vmax.f32 %v369, -1.0
    %v371 = vmul.f32 %v320, %v320
    %v372 = vmin.f32 16.0, %v371
    %v373 = vmul.f32 %v372, 2.1237322e-06
    %v374 = vadd.f32 %v373, 0.00028619796
    %v375 = vmul.f32 %v372, %v374
    %v376 = vadd.f32 %v375, 0.0036580483
    %v377 = vmul.f32 %v372, %v376
    %v378 = vadd.f32 %v377, 0.05243302
    %v379 = vmul.f32 %v372, %v378
    %v380 = vadd.f32 %v379, 0.18741608
    %v381 = vmul.f32 %v372, %v380
    %v382 = vadd.f32 %v381, 1.1283791
    %v383 = vmul.f32 %v320, %v382
    %v384 = vmul.f32 %v372, 3.8918573e-05
    %v385 = vadd.f32 %v384, 0.001143296
    %v386 = vmul.f32 %v372, %v385
    %v387 = vadd.f32 %v386, 0.014752088
    %v388 = vmul.f32 %v372, %v387
    %v389 = vadd.f32 %v388, 0.112945676
    %v390 = vmul.f32 %v372, %v389
    %v391 = vadd.f32 %v390, 0.4994258
    %v392 = vmul.f32 %v372, %v391
    %v393 = vadd.f32 %v392, 1.0
    %v394 = vrcp.pop %v393
    %v395 = vmul.f32 %v393, %v394
    %v396 = vsub.f32 1.0, %v395
    %v397 = vmul.f32 %v394, %v396
    %v398 = vadd.f32 %v394, %v397
    %vm399 = vweird.f32 %v393
    %vm400 = vweird.f32 %v394
    %vm401 = vmor %vm399, %vm400
    %v402 = vsel %vm401, %v394, %v398
    %v403 = vand.u32 2147483647, %v393
    %vm404 = vcmp.eq.f32.partialorder %v403, 8.507059e+37
    %v405 = vand.u32 %v393, 2147483648
    %v406 = vor.u32 1.1754944e-38, %v405
    %v407 = vsel %vm404, %v406, %v402
    %v408 = vmul.f32 %v383, %v407
    %v409 = vmin.f32 %v408, 1.0
    %v410 = vmax.f32 %v409, -1.0
    %v411 = vmul.f32 %v321, %v321
    %v412 = vmin.f32 16.0, %v411
    %v413 = vmul.f32 %v412, 2.1237322e-06
    %v414 = vadd.f32 %v413, 0.00028619796
    %v415 = vmul.f32 %v412, %v414
    %v416 = vadd.f32 %v415, 0.0036580483
    %v417 = vmul.f32 %v412, %v416
    %v418 = vadd.f32 %v417, 0.05243302
    %v419 = vmul.f32 %v412, %v418
    %v420 = vadd.f32 %v419, 0.18741608
    %v421 = vmul.f32 %v412, %v420
    %v422 = vadd.f32 %v421, 1.1283791
    %v423 = vmul.f32 %v321, %v422
    %v424 = vmul.f32 %v412, 3.8918573e-05
    %v425 = vadd.f32 %v424, 0.001143296
    %v426 = vmul.f32 %v412, %v425
    %v427 = vadd.f32 %v426, 0.014752088
    %v428 = vmul.f32 %v412, %v427
    %v429 = vadd.f32 %v428, 0.112945676
    %v430 = vmul.f32 %v412, %v429
    %v431 = vadd.f32 %v430, 0.4994258
    %v432 = vmul.f32 %v412, %v431
    %v433 = vadd.f32 %v432, 1.0
    %v434 = vrcp.pop %v433
    %v435 = vmul.f32 %v433, %v434
    %v436 = vsub.f32 1.0, %v435
    %v437 = vmul.f32 %v434, %v436
    %v438 = vadd.f32 %v434, %v437
    %vm439 = vweird.f32 %v433
    %vm440 = vweird.f32 %v434
    %vm441 = vmor %vm439, %vm440
    %v442 = vsel %vm441, %v434, %v438
    %v443 = vand.u32 2147483647, %v433
    %vm444 = vcmp.eq.f32.partialorder %v443, 8.507059e+37
    %v445 = vand.u32 %v433, 2147483648
    %v446 = vor.u32 1.1754944e-38, %v445
    %v447 = vsel %vm444, %v446, %v442
    %v448 = vmul.f32 %v423, %v447
    %v449 = vmin.f32 %v448, 1.0
    %v450 = vmax.f32 %v449, -1.0
    %v451 = vmul.f32 %v322, %v322
    %v452 = vmin.f32 16.0, %v451
    %v453 = vmul.f32 %v452, 2.1237322e-06
    %v454 = vadd.f32 %v453, 0.00028619796
    %v455 = vmul.f32 %v452, %v454
    %v456 = vadd.f32 %v455, 0.0036580483
    %v457 = vmul.f32 %v452, %v456
    %v458 = vadd.f32 %v457, 0.05243302
    %v459 = vmul.f32 %v452, %v458
    %v460 = vadd.f32 %v459, 0.18741608
    %v461 = vmul.f32 %v452, %v460
    %v462 = vadd.f32 %v461, 1.1283791
    %v463 = vmul.f32 %v322, %v462
    %v464 = vmul.f32 %v452, 3.8918573e-05
    %v465 = vadd.f32 %v464, 0.001143296
    %v466 = vmul.f32 %v452, %v465
    %v467 = vadd.f32 %v466, 0.014752088
    %v468 = vmul.f32 %v452, %v467
    %v469 = vadd.f32 %v468, 0.112945676
    %v470 = vmul.f32 %v452, %v469
    %v471 = vadd.f32 %v470, 0.4994258
    %v472 = vmul.f32 %v452, %v471
    %v473 = vadd.f32 %v472, 1.0
    %v474 = vrcp.pop %v473
    %v475 = vmul.f32 %v473, %v474
    %v476 = vsub.f32 1.0, %v475
    %v477 = vmul.f32 %v474, %v476
    %v478 = vadd.f32 %v474, %v477
    %vm479 = vweird.f32 %v473
    %vm480 = vweird.f32 %v474
    %vm481 = vmor %vm479, %vm480
    %v482 = vsel %vm481, %v474, %v478
    %v483 = vand.u32 2147483647, %v473
    %vm484 = vcmp.eq.f32.partialorder %v483, 8.507059e+37
    %v485 = vand.u32 %v473, 2147483648
    %v486 = vor.u32 1.1754944e-38, %v485
    %v487 = vsel %vm484, %v486, %v482
    %v488 = vmul.f32 %v463, %v487
    %v489 = vmin.f32 %v488, 1.0
    %v490 = vmax.f32 %v489, -1.0
    %v491 = vmul.f32 %v323, %v323
    %v492 = vmin.f32 16.0, %v491
    %v493 = vmul.f32 %v492, 2.1237322e-06
    %v494 = vadd.f32 %v493, 0.00028619796
    %v495 = vmul.f32 %v492, %v494
    %v496 = vadd.f32 %v495, 0.0036580483
    %v497 = vmul.f32 %v492, %v496
    %v498 = vadd.f32 %v497, 0.05243302
    %v499 = vmul.f32 %v492, %v498
    %v500 = vadd.f32 %v499, 0.18741608
    %v501 = vmul.f32 %v492, %v500
    %v502 = vadd.f32 %v501, 1.1283791
    %v503 = vmul.f32 %v323, %v502
    %v504 = vmul.f32 %v492, 3.8918573e-05
    %v505 = vadd.f32 %v504, 0.001143296
    %v506 = vmul.f32 %v492, %v505
    %v507 = vadd.f32 %v506, 0.014752088
    %v508 = vmul.f32 %v492, %v507
    %v509 = vadd.f32 %v508, 0.112945676
    %v510 = vmul.f32 %v492, %v509
    %v511 = vadd.f32 %v510, 0.4994258
    %v512 = vmul.f32 %v492, %v511
    %v513 = vadd.f32 %v512, 1.0
    %v514 = vrcp.pop %v513
    %v515 = vmul.f32 %v513, %v514
    %v516 = vsub.f32 1.0, %v515
    %v517 = vmul.f32 %v514, %v516
    %v518 = vadd.f32 %v514, %v517
    %vm519 = vweird.f32 %v513
    %vm520 = vweird.f32 %v514
    %vm521 = vmor %vm519, %vm520
    %v522 = vsel %vm521, %v514, %v518
    %v523 = vand.u32 2147483647, %v513
    %vm524 = vcmp.eq.f32.partialorder %v523, 8.507059e+37
    %v525 = vand.u32 %v513, 2147483648
    %v526 = vor.u32 1.1754944e-38, %v525
    %v527 = vsel %vm524, %v526, %v522
    %v528 = vmul.f32 %v503, %v527
    %v529 = vmin.f32 %v528, 1.0
    %v530 = vmax.f32 %v529, -1.0
    %v531 = vmul.f32 %v324, %v324
    %v532 = vmin.f32 16.0, %v531
    %v533 = vmul.f32 %v532, 2.1237322e-06
    %v534 = vadd.f32 %v533, 0.00028619796
    %v535 = vmul.f32 %v532, %v534
    %v536 = vadd.f32 %v535, 0.0036580483
    %v537 = vmul.f32 %v532, %v536
    %v538 = vadd.f32 %v537, 0.05243302
    %v539 = vmul.f32 %v532, %v538
    %v540 = vadd.f32 %v539, 0.18741608
    %v541 = vmul.f32 %v532, %v540
    %v542 = vadd.f32 %v541, 1.1283791
    %v543 = vmul.f32 %v324, %v542
    %v544 = vmul.f32 %v532, 3.8918573e-05
    %v545 = vadd.f32 %v544, 0.001143296
    %v546 = vmul.f32 %v532, %v545
    %v547 = vadd.f32 %v546, 0.014752088
    %v548 = vmul.f32 %v532, %v547
    %v549 = vadd.f32 %v548, 0.112945676
    %v550 = vmul.f32 %v532, %v549
    %v551 = vadd.f32 %v550, 0.4994258
    %v552 = vmul.f32 %v532, %v551
    %v553 = vadd.f32 %v552, 1.0
    %v554 = vrcp.pop %v553
    %v555 = vmul.f32 %v553, %v554
    %v556 = vsub.f32 1.0, %v555
    %v557 = vmul.f32 %v554, %v556
    %v558 = vadd.f32 %v554, %v557
    %vm559 = vweird.f32 %v553
    %vm560 = vweird.f32 %v554
    %vm561 = vmor %vm559, %vm560
    %v562 = vsel %vm561, %v554, %v558
    %v563 = vand.u32 2147483647, %v553
    %vm564 = vcmp.eq.f32.partialorder %v563, 8.507059e+37
    %v565 = vand.u32 %v553, 2147483648
    %v566 = vor.u32 1.1754944e-38, %v565
    %v567 = vsel %vm564, %v566, %v562
    %v568 = vmul.f32 %v543, %v567
    %v569 = vmin.f32 %v568, 1.0
    %v570 = vmax.f32 %v569, -1.0
    %v571 = vmul.f32 %v325, %v325
    %v572 = vmin.f32 16.0, %v571
    %v573 = vmul.f32 %v572, 2.1237322e-06
    %v574 = vadd.f32 %v573, 0.00028619796
    %v575 = vmul.f32 %v572, %v574
    %v576 = vadd.f32 %v575, 0.0036580483
    %v577 = vmul.f32 %v572, %v576
    %v578 = vadd.f32 %v577, 0.05243302
    %v579 = vmul.f32 %v572, %v578
    %v580 = vadd.f32 %v579, 0.18741608
    %v581 = vmul.f32 %v572, %v580
    %v582 = vadd.f32 %v581, 1.1283791
    %v583 = vmul.f32 %v325, %v582
    %v584 = vmul.f32 %v572, 3.8918573e-05
    %v585 = vadd.f32 %v584, 0.001143296
    %v586 = vmul.f32 %v572, %v585
    %v587 = vadd.f32 %v586, 0.014752088
    %v588 = vmul.f32 %v572, %v587
    %v589 = vadd.f32 %v588, 0.112945676
    %v590 = vmul.f32 %v572, %v589
    %v591 = vadd.f32 %v590, 0.4994258
    %v592 = vmul.f32 %v572, %v591
    %v593 = vadd.f32 %v592, 1.0
    %v594 = vrcp.pop %v593
    %v595 = vmul.f32 %v593, %v594
    %v596 = vsub.f32 1.0, %v595
    %v597 = vmul.f32 %v594, %v596
    %v598 = vadd.f32 %v594, %v597
    %vm599 = vweird.f32 %v593
    %vm600 = vweird.f32 %v594
    %vm601 = vmor %vm599, %vm600
    %v602 = vsel %vm601, %v594, %v598
    %v603 = vand.u32 2147483647, %v593
    %vm604 = vcmp.eq.f32.partialorder %v603, 8.507059e+37
    %v605 = vand.u32 %v593, 2147483648
    %v606 = vor.u32 1.1754944e-38, %v605
    %v607 = vsel %vm604, %v606, %v602
    %v608 = vmul.f32 %v583, %v607
    %v609 = vmin.f32 %v608, 1.0
    %v610 = vmax.f32 %v609, -1.0
    %v611 = vmul.f32 %v326, %v326
    %v612 = vmin.f32 16.0, %v611
    %v613 = vmul.f32 %v612, 2.1237322e-06
    %v614 = vadd.f32 %v613, 0.00028619796
    %v615 = vmul.f32 %v612, %v614
    %v616 = vadd.f32 %v615, 0.0036580483
    %v617 = vmul.f32 %v612, %v616
    %v618 = vadd.f32 %v617, 0.05243302
    %v619 = vmul.f32 %v612, %v618
    %v620 = vadd.f32 %v619, 0.18741608
    %v621 = vmul.f32 %v612, %v620
    %v622 = vadd.f32 %v621, 1.1283791
    %v623 = vmul.f32 %v326, %v622
    %v624 = vmul.f32 %v612, 3.8918573e-05
    %v625 = vadd.f32 %v624, 0.001143296
    %v626 = vmul.f32 %v612, %v625
    %v627 = vadd.f32 %v626, 0.014752088
    %v628 = vmul.f32 %v612, %v627
    %v629 = vadd.f32 %v628, 0.112945676
    %v630 = vmul.f32 %v612, %v629
    %v631 = vadd.f32 %v630, 0.4994258
    %v632 = vmul.f32 %v612, %v631
    %v633 = vadd.f32 %v632, 1.0
    %v634 = vrcp.pop %v633
    %v635 = vmul.f32 %v633, %v634
    %v636 = vsub.f32 1.0, %v635
    %v637 = vmul.f32 %v634, %v636
    %v638 = vadd.f32 %v634, %v637
    %vm639 = vweird.f32 %v633
    %vm640 = vweird.f32 %v634
    %vm641 = vmor %vm639, %vm640
    %v642 = vsel %vm641, %v634, %v638
    %v643 = vand.u32 2147483647, %v633
    %vm644 = vcmp.eq.f32.partialorder %v643, 8.507059e+37
    %v645 = vand.u32 %v633, 2147483648
    %v646 = vor.u32 1.1754944e-38, %v645
    %v647 = vsel %vm644, %v646, %v642
    %v648 = vmul.f32 %v623, %v647
    %v649 = vmin.f32 %v648, 1.0
    %v650 = vmax.f32 %v649, -1.0
    %v651 = vmul.f32 %v327, %v327
    %v652 = vmin.f32 16.0, %v651
    %v653 = vmul.f32 %v652, 2.1237322e-06
    %v654 = vadd.f32 %v653, 0.00028619796
    %v655 = vmul.f32 %v652, %v654
    %v656 = vadd.f32 %v655, 0.0036580483
    %v657 = vmul.f32 %v652, %v656
    %v658 = vadd.f32 %v657, 0.05243302
    %v659 = vmul.f32 %v652, %v658
    %v660 = vadd.f32 %v659, 0.18741608
    %v661 = vmul.f32 %v652, %v660
    %v662 = vadd.f32 %v661, 1.1283791
    %v663 = vmul.f32 %v327, %v662
    %v664 = vmul.f32 %v652, 3.8918573e-05
    %v665 = vadd.f32 %v664, 0.001143296
    %v666 = vmul.f32 %v652, %v665
    %v667 = vadd.f32 %v666, 0.014752088
    %v668 = vmul.f32 %v652, %v667
    %v669 = vadd.f32 %v668, 0.112945676
    %v670 = vmul.f32 %v652, %v669
    %v671 = vadd.f32 %v670, 0.4994258
    %v672 = vmul.f32 %v652, %v671
    %v673 = vadd.f32 %v672, 1.0
    %v674 = vrcp.pop %v673
    %v675 = vmul.f32 %v673, %v674
    %v676 = vsub.f32 1.0, %v675
    %v677 = vmul.f32 %v674, %v676
    %v678 = vadd.f32 %v674, %v677
    %vm679 = vweird.f32 %v673
    %vm680 = vweird.f32 %v674
    %vm681 = vmor %vm679, %vm680
    %v682 = vsel %vm681, %v674, %v678
    %v683 = vand.u32 2147483647, %v673
    %vm684 = vcmp.eq.f32.partialorder %v683, 8.507059e+37
    %v685 = vand.u32 %v673, 2147483648
    %v686 = vor.u32 1.1754944e-38, %v685
    %v687 = vsel %vm684, %v686, %v682
    %v688 = vmul.f32 %v663, %v687
    %v689 = vmin.f32 %v688, 1.0
    %v690 = vmax.f32 %v689, -1.0
    %v691 = vmul.f32 %v328, %v328
    %v692 = vmin.f32 16.0, %v691
    %v693 = vmul.f32 %v692, 2.1237322e-06
    %v694 = vadd.f32 %v693, 0.00028619796
    %v695 = vmul.f32 %v692, %v694
    %v696 = vadd.f32 %v695, 0.0036580483
    %v697 = vmul.f32 %v692, %v696
    %v698 = vadd.f32 %v697, 0.05243302
    %v699 = vmul.f32 %v692, %v698
    %v700 = vadd.f32 %v699, 0.18741608
    %v701 = vmul.f32 %v692, %v700
    %v702 = vadd.f32 %v701, 1.1283791
    %v703 = vmul.f32 %v328, %v702
    %v704 = vmul.f32 %v692, 3.8918573e-05
    %v705 = vadd.f32 %v704, 0.001143296
    %v706 = vmul.f32 %v692, %v705
    %v707 = vadd.f32 %v706, 0.014752088
    %v708 = vmul.f32 %v692, %v707
    %v709 = vadd.f32 %v708, 0.112945676
    %v710 = vmul.f32 %v692, %v709
    %v711 = vadd.f32 %v710, 0.4994258
    %v712 = vmul.f32 %v692, %v711
    %v713 = vadd.f32 %v712, 1.0
    %v714 = vrcp.pop %v713
    %v715 = vmul.f32 %v713, %v714
    %v716 = vsub.f32 1.0, %v715
    %v717 = vmul.f32 %v714, %v716
    %v718 = vadd.f32 %v714, %v717
    %vm719 = vweird.f32 %v713
    %vm720 = vweird.f32 %v714
    %vm721 = vmor %vm719, %vm720
    %v722 = vsel %vm721, %v714, %v718
    %v723 = vand.u32 2147483647, %v713
    %vm724 = vcmp.eq.f32.partialorder %v723, 8.507059e+37
    %v725 = vand.u32 %v713, 2147483648
    %v726 = vor.u32 1.1754944e-38, %v725
    %v727 = vsel %vm724, %v726, %v722
    %v728 = vmul.f32 %v703, %v727
    %v729 = vmin.f32 %v728, 1.0
    %v730 = vmax.f32 %v729, -1.0
    %v731 = vmul.f32 %v329, %v329
    %v732 = vmin.f32 16.0, %v731
    %v733 = vmul.f32 %v732, 2.1237322e-06
    %v734 = vadd.f32 %v733, 0.00028619796
    %v735 = vmul.f32 %v732, %v734
    %v736 = vadd.f32 %v735, 0.0036580483
    %v737 = vmul.f32 %v732, %v736
    %v738 = vadd.f32 %v737, 0.05243302
    %v739 = vmul.f32 %v732, %v738
    %v740 = vadd.f32 %v739, 0.18741608
    %v741 = vmul.f32 %v732, %v740
    %v742 = vadd.f32 %v741, 1.1283791
    %v743 = vmul.f32 %v329, %v742
    %v744 = vmul.f32 %v732, 3.8918573e-05
    %v745 = vadd.f32 %v744, 0.001143296
    %v746 = vmul.f32 %v732, %v745
    %v747 = vadd.f32 %v746, 0.014752088
    %v748 = vmul.f32 %v732, %v747
    %v749 = vadd.f32 %v748, 0.112945676
    %v750 = vmul.f32 %v732, %v749
    %v751 = vadd.f32 %v750, 0.4994258
    %v752 = vmul.f32 %v732, %v751
    %v753 = vadd.f32 %v752, 1.0
    %v754 = vrcp.pop %v753
    %v755 = vmul.f32 %v753, %v754
    %v756 = vsub.f32 1.0, %v755
    %v757 = vmul.f32 %v754, %v756
    %v758 = vadd.f32 %v754, %v757
    %vm759 = vweird.f32 %v753
    %vm760 = vweird.f32 %v754
    %vm761 = vmor %vm759, %vm760
    %v762 = vsel %vm761, %v754, %v758
    %v763 = vand.u32 2147483647, %v753
    %vm764 = vcmp.eq.f32.partialorder %v763, 8.507059e+37
    %v765 = vand.u32 %v753, 2147483648
    %v766 = vor.u32 1.1754944e-38, %v765
    %v767 = vsel %vm764, %v766, %v762
    %v768 = vmul.f32 %v743, %v767
    %v769 = vmin.f32 %v768, 1.0
    %v770 = vmax.f32 %v769, -1.0
    %v771 = vmul.f32 %v330, %v330
    %v772 = vmin.f32 16.0, %v771
    %v773 = vmul.f32 %v772, 2.1237322e-06
    %v774 = vadd.f32 %v773, 0.00028619796
    %v775 = vmul.f32 %v772, %v774
    %v776 = vadd.f32 %v775, 0.0036580483
    %v777 = vmul.f32 %v772, %v776
    %v778 = vadd.f32 %v777, 0.05243302
    %v779 = vmul.f32 %v772, %v778
    %v780 = vadd.f32 %v779, 0.18741608
    %v781 = vmul.f32 %v772, %v780
    %v782 = vadd.f32 %v781, 1.1283791
    %v783 = vmul.f32 %v330, %v782
    %v784 = vmul.f32 %v772, 3.8918573e-05
    %v785 = vadd.f32 %v784, 0.001143296
    %v786 = vmul.f32 %v772, %v785
    %v787 = vadd.f32 %v786, 0.014752088
    %v788 = vmul.f32 %v772, %v787
    %v789 = vadd.f32 %v788, 0.112945676
    %v790 = vmul.f32 %v772, %v789
    %v791 = vadd.f32 %v790, 0.4994258
    %v792 = vmul.f32 %v772, %v791
    %v793 = vadd.f32 %v792, 1.0
    %v794 = vrcp.pop %v793
    %v795 = vmul.f32 %v793, %v794
    %v796 = vsub.f32 1.0, %v795
    %v797 = vmul.f32 %v794, %v796
    %v798 = vadd.f32 %v794, %v797
    %vm799 = vweird.f32 %v793
    %vm800 = vweird.f32 %v794
    %vm801 = vmor %vm799, %vm800
    %v802 = vsel %vm801, %v794, %v798
    %v803 = vand.u32 2147483647, %v793
    %vm804 = vcmp.eq.f32.partialorder %v803, 8.507059e+37
    %v805 = vand.u32 %v793, 2147483648
    %v806 = vor.u32 1.1754944e-38, %v805
    %v807 = vsel %vm804, %v806, %v802
    %v808 = vmul.f32 %v783, %v807
    %v809 = vmin.f32 %v808, 1.0
    %v810 = vmax.f32 %v809, -1.0
    %v811 = vadd.f32 %v370, 1.0
    %v812 = vadd.f32 %v410, 1.0
    %v813 = vadd.f32 %v450, 1.0
    %v814 = vadd.f32 %v490, 1.0
    %v815 = vadd.f32 %v530, 1.0
    %v816 = vadd.f32 %v570, 1.0
    %v817 = vadd.f32 %v610, 1.0
    %v818 = vadd.f32 %v650, 1.0
    %v819 = vadd.f32 %v690, 1.0
    %v820 = vadd.f32 %v730, 1.0
    %v821 = vadd.f32 %v770, 1.0
    %v822 = vadd.f32 %v810, 1.0
    %v823 = vmul.f32 %v307, %v811
    %v824 = vmul.f32 %v308, %v812
    %v825 = vmul.f32 %v309, %v813
    %v826 = vmul.f32 %v310, %v814
    %v827 = vmul.f32 %v311, %v815
    %v828 = vmul.f32 %v312, %v816
    %v829 = vmul.f32 %v313, %v817
    %v830 = vmul.f32 %v314, %v818
    %v831 = vmul.f32 %v315, %v819
    %v832 = vmul.f32 %v316, %v820
    %v833 = vmul.f32 %v317, %v821
    %v834 = vmul.f32 %v318, %v822
    %v835 = vld [vmem:[#allocation8] sm:$0xff]
    %v836 = vld [vmem:[#allocation8 + $0x8] sm:$0xff]
    %v837 = vld [vmem:[#allocation8 + $0x10] sm:$0xff]
    %v838 = vld [vmem:[#allocation8 + $0x18] sm:$0xff]
    %v839 = vld [vmem:[#allocation8 + $0x20] sm:$0xff]
    %v840 = vld [vmem:[#allocation8 + $0x28] sm:$0xff]
    %v841 = vld [vmem:[#allocation8 + $0x30] sm:$0xff]
    %v842 = vld [vmem:[#allocation8 + $0x38] sm:$0xff]
    %v843 = vld [vmem:[#allocation8 + $0x40] sm:$0xff]
    %v844 = vld [vmem:[#allocation8 + $0x48] sm:$0xff]
    %v845 = vld [vmem:[#allocation8 + $0x50] sm:$0xff]
    %v846 = vld [vmem:[#allocation8 + $0x58] sm:$0xff]
    %v847 = vld [vmem:[#allocation8 + $0x60] sm:$0xff]
    %v848 = vld [vmem:[#allocation8 + $0x68] sm:$0xff]
    %v849 = vld [vmem:[#allocation8 + $0x70] sm:$0xff]
    %v850 = vld [vmem:[#allocation8 + $0x78] sm:$0xff]
    %v851 = vld [vmem:[#allocation8 + $0x80] sm:$0xff]
    %v852 = vld [vmem:[#allocation8 + $0x88] sm:$0xff]
    %v853 = vld [vmem:[#allocation8 + $0x90] sm:$0xff]
    %v854 = vld [vmem:[#allocation8 + $0x98] sm:$0xff]
    %v855 = vld [vmem:[#allocation8 + $0xa0] sm:$0xff]
    %v856 = vld [vmem:[#allocation8 + $0xa8] sm:$0xff]
    %v857 = vld [vmem:[#allocation8 + $0xb0] sm:$0xff]
    %v858 = vld [vmem:[#allocation8 + $0xb8] sm:$0xff]
    %v859 = vld [vmem:[#allocation8 + $0xc0] sm:$0xff]
    %v860 = vld [vmem:[#allocation8 + $0xc8] sm:$0xff]
    %v861 = vld [vmem:[#allocation8 + $0xd0] sm:$0xff]
    %v862 = vld [vmem:[#allocation8 + $0xd8] sm:$0xff]
    %v863 = vld [vmem:[#allocation8 + $0xe0] sm:$0xff]
    %v864 = vld [vmem:[#allocation8 + $0xe8] sm:$0xff]
    %v865 = vld [vmem:[#allocation8 + $0xf0] sm:$0xff]
    %v866 = vld [vmem:[#allocation8 + $0xf8] sm:$0xff]
    %v867 = vld [vmem:[#allocation8 + $0x100] sm:$0xff]
    %v868 = vld [vmem:[#allocation8 + $0x108] sm:$0xff]
    %v869 = vld [vmem:[#allocation8 + $0x110] sm:$0xff]
    %v870 = vld [vmem:[#allocation8 + $0x118] sm:$0xff]
    %v871 = vld [vmem:[#allocation8 + $0x120] sm:$0xff]
    %v872 = vld [vmem:[#allocation8 + $0x128] sm:$0xff]
    %v873 = vld [vmem:[#allocation8 + $0x130] sm:$0xff]
    %v874 = vld [vmem:[#allocation8 + $0x138] sm:$0xff]
    %v875 = vld [vmem:[#allocation8 + $0x140] sm:$0xff]
    %v876 = vld [vmem:[#allocation8 + $0x148] sm:$0xff]
    %v877 = vld [vmem:[#allocation8 + $0x150] sm:$0xff]
    %v878 = vld [vmem:[#allocation8 + $0x158] sm:$0xff]
    %v879 = vld [vmem:[#allocation8 + $0x160] sm:$0xff]
    %v880 = vld [vmem:[#allocation8 + $0x168] sm:$0xff]
    %v881 = vld [vmem:[#allocation8 + $0x170] sm:$0xff]
    %v882 = vld [vmem:[#allocation8 + $0x178] sm:$0xff]
    %v883 = vld [vmem:[#allocation8 + $0x180] sm:$0xff]
    %v884 = vld [vmem:[#allocation8 + $0x188] sm:$0xff]
    %v885 = vld [vmem:[#allocation8 + $0x190] sm:$0xff]
    %v886 = vld [vmem:[#allocation8 + $0x198] sm:$0xff]
    %v887 = vld [vmem:[#allocation8 + $0x1a0] sm:$0xff]
    %v888 = vld [vmem:[#allocation8 + $0x1a8] sm:$0xff]
    %v889 = vld [vmem:[#allocation8 + $0x1b0] sm:$0xff]
    %v890 = vld [vmem:[#allocation8 + $0x1b8] sm:$0xff]
    %v891 = vld [vmem:[#allocation8 + $0x1c0] sm:$0xff]
    %v892 = vld [vmem:[#allocation8 + $0x1c8] sm:$0xff]
    %v893 = vld [vmem:[#allocation8 + $0x1d0] sm:$0xff]
    %v894 = vld [vmem:[#allocation8 + $0x1d8] sm:$0xff]
    %v895 = vld [vmem:[#allocation8 + $0x1e0] sm:$0xff]
    %v896 = vld [vmem:[#allocation8 + $0x1e8] sm:$0xff]
    %v897 = vld [vmem:[#allocation8 + $0x1f0] sm:$0xff]
    %v898 = vld [vmem:[#allocation8 + $0x1f8] sm:$0xff]
    %v899 = vld [vmem:[#allocation8 + $0x200] sm:$0xff]
    %v900 = vld [vmem:[#allocation8 + $0x208] sm:$0xff]
    %v901 = vld [vmem:[#allocation8 + $0x210] sm:$0xff]
    %v902 = vld [vmem:[#allocation8 + $0x218] sm:$0xff]
    %v903 = vld [vmem:[#allocation8 + $0x220] sm:$0xff]
    %v904 = vld [vmem:[#allocation8 + $0x228] sm:$0xff]
    %v905 = vld [vmem:[#allocation8 + $0x230] sm:$0xff]
    %v906 = vld [vmem:[#allocation8 + $0x238] sm:$0xff]
    %v907 = vld [vmem:[#allocation8 + $0x240] sm:$0xff]
    %v908 = vld [vmem:[#allocation8 + $0x248] sm:$0xff]
    %v909 = vld [vmem:[#allocation8 + $0x250] sm:$0xff]
    %v910 = vld [vmem:[#allocation8 + $0x258] sm:$0xff]
    %v911 = vld [vmem:[#allocation8 + $0x260] sm:$0xff]
    %v912 = vld [vmem:[#allocation8 + $0x268] sm:$0xff]
    %v913 = vld [vmem:[#allocation8 + $0x270] sm:$0xff]
    %v914 = vld [vmem:[#allocation8 + $0x278] sm:$0xff]
    %v915 = vld [vmem:[#allocation8 + $0x280] sm:$0xff]
    %v916 = vld [vmem:[#allocation8 + $0x288] sm:$0xff]
    %v917 = vld [vmem:[#allocation8 + $0x290] sm:$0xff]
    %v918 = vld [vmem:[#allocation8 + $0x298] sm:$0xff]
    %v919 = vld [vmem:[#allocation8 + $0x2a0] sm:$0xff]
    %v920 = vld [vmem:[#allocation8 + $0x2a8] sm:$0xff]
    %v921 = vld [vmem:[#allocation8 + $0x2b0] sm:$0xff]
    %v922 = vld [vmem:[#allocation8 + $0x2b8] sm:$0xff]
    %v923 = vld [vmem:[#allocation8 + $0x2c0] sm:$0xff]
    %v924 = vld [vmem:[#allocation8 + $0x2c8] sm:$0xff]
    %v925 = vld [vmem:[#allocation8 + $0x2d0] sm:$0xff]
    %v926 = vld [vmem:[#allocation8 + $0x2d8] sm:$0xff]
    %v927 = vld [vmem:[#allocation8 + $0x2e0] sm:$0xff]
    %v928 = vld [vmem:[#allocation8 + $0x2e8] sm:$0xff]
    %v929 = vld [vmem:[#allocation8 + $0x2f0] sm:$0xff]
    %v930 = vld [vmem:[#allocation8 + $0x2f8] sm:$0xff]
    %v931 = vld [vmem:[#allocation8 + $0x300] sm:$0xff]
    %v932 = vld [vmem:[#allocation8 + $0x308] sm:$0xff]
    %v933 = vld [vmem:[#allocation8 + $0x310] sm:$0xff]
    %v934 = vld [vmem:[#allocation8 + $0x318] sm:$0xff]
    %v935 = vld [vmem:[#allocation8 + $0x320] sm:$0xff]
    %v936 = vld [vmem:[#allocation8 + $0x328] sm:$0xff]
    %v937 = vld [vmem:[#allocation8 + $0x330] sm:$0xff]
    %v938 = vld [vmem:[#allocation8 + $0x338] sm:$0xff]
    %v939 = vld [vmem:[#allocation8 + $0x340] sm:$0xff]
    %v940 = vld [vmem:[#allocation8 + $0x348] sm:$0xff]
    %v941 = vld [vmem:[#allocation8 + $0x350] sm:$0xff]
    %v942 = vld [vmem:[#allocation8 + $0x358] sm:$0xff]
    %v943 = vld [vmem:[#allocation8 + $0x360] sm:$0xff]
    %v944 = vld [vmem:[#allocation8 + $0x368] sm:$0xff]
    %v945 = vld [vmem:[#allocation8 + $0x370] sm:$0xff]
    %v946 = vld [vmem:[#allocation8 + $0x378] sm:$0xff]
    %v947 = vld [vmem:[#allocation8 + $0x380] sm:$0xff]
    %v948 = vld [vmem:[#allocation8 + $0x388] sm:$0xff]
    %v949 = vld [vmem:[#allocation8 + $0x390] sm:$0xff]
    %v950 = vld [vmem:[#allocation8 + $0x398] sm:$0xff]
    %v951 = vld [vmem:[#allocation8 + $0x3a0] sm:$0xff]
    %v952 = vld [vmem:[#allocation8 + $0x3a8] sm:$0xff]
    %v953 = vld [vmem:[#allocation8 + $0x3b0] sm:$0xff]
    %v954 = vld [vmem:[#allocation8 + $0x3b8] sm:$0xff]
    %v955 = vld [vmem:[#allocation8 + $0x3c0] sm:$0xff]
    %v956 = vld [vmem:[#allocation8 + $0x3c8] sm:$0xff]
    %v957 = vld [vmem:[#allocation8 + $0x3d0] sm:$0xff]
    %v958 = vld [vmem:[#allocation8 + $0x3d8] sm:$0xff]
    %v959 = vld [vmem:[#allocation8 + $0x3e0] sm:$0xff]
    %v960 = vld [vmem:[#allocation8 + $0x3e8] sm:$0xff]
    %v961 = vld [vmem:[#allocation8 + $0x3f0] sm:$0xff]
    %v962 = vld [vmem:[#allocation8 + $0x3f8] sm:$0xff]
    %v963 = vld [vmem:[%s4] sm:$0x3]
    %v965 = vperm.slane %v963, 0
    %v966 = vperm.slane %v963, 1
    %969 = vmatpush.msra.mxu0 %v865
    %970 = vmatpush.msra.mxu0 %v863
    %971 = vmatpush.msra.mxu0 %v861
    %972 = vmatpush.msra.mxu0 %v859
    %973 = vmatpush.msra.mxu0 %v857
    %974 = vmatpush.msra.mxu0 %v855
    %975 = vmatpush.msra.mxu0 %v853
    %976 = vmatpush.msra.mxu0 %v851
    %977 = vmatpush.msra.mxu0 %v849
    %978 = vmatpush.msra.mxu0 %v847
    %979 = vmatpush.msra.mxu0 %v845
    %980 = vmatpush.msra.mxu0 %v843
    %981 = vmatpush.msra.mxu0 %v841
    %982 = vmatpush.msra.mxu0 %v839
    %983 = vmatpush.msra.mxu0 %v837
    %984 = vmatpush.msra.mxu0 %v835
    %985 = vmatmul.f32.gmra.mxu0 %v823
    %v986 = vpop.f32.mrf.mxu0
    %v987 = vadd.f32 %v965, %v986
    %988 = vmatmul.f32.gmra.mxu0 %v829
    %v989 = vpop.f32.mrf.mxu0
    %v990 = vadd.f32 %v965, %v989
    %991 = vdwg.mxu0
    %992 = vmatpush.msra.mxu0 %v897
    %993 = vmatpush.msra.mxu0 %v895
    %994 = vmatpush.msra.mxu0 %v893
    %995 = vmatpush.msra.mxu0 %v891
    %996 = vmatpush.msra.mxu0 %v889
    %997 = vmatpush.msra.mxu0 %v887
    %998 = vmatpush.msra.mxu0 %v885
    %999 = vmatpush.msra.mxu0 %v883
    %1000 = vmatpush.msra.mxu0 %v881
    %1001 = vmatpush.msra.mxu0 %v879
    %1002 = vmatpush.msra.mxu0 %v877
    %1003 = vmatpush.msra.mxu0 %v875
    %1004 = vmatpush.msra.mxu0 %v873
    %1005 = vmatpush.msra.mxu0 %v871
    %1006 = vmatpush.msra.mxu0 %v869
    %1007 = vmatpush.msra.mxu0 %v867
    %1008 = vmatmul.f32.gmra.mxu0 %v824
    %v1009 = vpop.f32.mrf.mxu0
    %v1010 = vadd.f32 %v987, %v1009
    %1011 = vmatmul.f32.gmra.mxu0 %v830
    %v1012 = vpop.f32.mrf.mxu0
    %v1013 = vadd.f32 %v990, %v1012
    %1014 = vdwg.mxu0
    %1015 = vmatpush.msra.mxu0 %v929
    %1016 = vmatpush.msra.mxu0 %v927
    %1017 = vmatpush.msra.mxu0 %v925
    %1018 = vmatpush.msra.mxu0 %v923
    %1019 = vmatpush.msra.mxu0 %v921
    %1020 = vmatpush.msra.mxu0 %v919
    %1021 = vmatpush.msra.mxu0 %v917
    %1022 = vmatpush.msra.mxu0 %v915
    %1023 = vmatpush.msra.mxu0 %v913
    %1024 = vmatpush.msra.mxu0 %v911
    %1025 = vmatpush.msra.mxu0 %v909
    %1026 = vmatpush.msra.mxu0 %v907
    %1027 = vmatpush.msra.mxu0 %v905
    %1028 = vmatpush.msra.mxu0 %v903
    %1029 = vmatpush.msra.mxu0 %v901
    %1030 = vmatpush.msra.mxu0 %v899
    %1031 = vmatmul.f32.gmra.mxu0 %v825
    %v1032 = vpop.f32.mrf.mxu0
    %v1033 = vadd.f32 %v1010, %v1032
    %1034 = vmatmul.f32.gmra.mxu0 %v831
    %v1035 = vpop.f32.mrf.mxu0
    %v1036 = vadd.f32 %v1013, %v1035
    %1037 = vdwg.mxu0
    %1038 = vmatpush.msra.mxu0 %v961
    %1039 = vmatpush.msra.mxu0 %v959
    %1040 = vmatpush.msra.mxu0 %v957
    %1041 = vmatpush.msra.mxu0 %v955
    %1042 = vmatpush.msra.mxu0 %v953
    %1043 = vmatpush.msra.mxu0 %v951
    %1044 = vmatpush.msra.mxu0 %v949
    %1045 = vmatpush.msra.mxu0 %v947
    %1046 = vmatpush.msra.mxu0 %v945
    %1047 = vmatpush.msra.mxu0 %v943
    %1048 = vmatpush.msra.mxu0 %v941
    %1049 = vmatpush.msra.mxu0 %v939
    %1050 = vmatpush.msra.mxu0 %v937
    %1051 = vmatpush.msra.mxu0 %v935
    %1052 = vmatpush.msra.mxu0 %v933
    %1053 = vmatpush.msra.mxu0 %v931
    %1054 = vmatmul.f32.gmra.mxu0 %v826
    %v1055 = vpop.f32.mrf.mxu0
    %v1056 = vadd.f32 %v1033, %v1055
    %1057 = vmatmul.f32.gmra.mxu0 %v832
    %v1058 = vpop.f32.mrf.mxu0
    %v1059 = vadd.f32 %v1036, %v1058
    %1060 = vdwg.mxu0
    %1061 = vmatpush.msra.mxu0 %v866
    %1062 = vmatpush.msra.mxu0 %v864
    %1063 = vmatpush.msra.mxu0 %v862
    %1064 = vmatpush.msra.mxu0 %v860
    %1065 = vmatpush.msra.mxu0 %v858
    %1066 = vmatpush.msra.mxu0 %v856
    %1067 = vmatpush.msra.mxu0 %v854
    %1068 = vmatpush.msra.mxu0 %v852
    %1069 = vmatpush.msra.mxu0 %v850
    %1070 = vmatpush.msra.mxu0 %v848
    %1071 = vmatpush.msra.mxu0 %v846
    %1072 = vmatpush.msra.mxu0 %v844
    %1073 = vmatpush.msra.mxu0 %v842
    %1074 = vmatpush.msra.mxu0 %v840
    %1075 = vmatpush.msra.mxu0 %v838
    %1076 = vmatpush.msra.mxu0 %v836
    %1077 = vmatmul.f32.gmra.mxu0 %v823
    %v1078 = vpop.f32.mrf.mxu0
    %v1079 = vadd.f32 %v966, %v1078
    %1080 = vmatmul.f32.gmra.mxu0 %v829
    %v1081 = vpop.f32.mrf.mxu0
    %v1082 = vadd.f32 %v966, %v1081
    %1083 = vdwg.mxu0
    %1084 = vmatpush.msra.mxu0 %v898
    %1085 = vmatpush.msra.mxu0 %v896
    %1086 = vmatpush.msra.mxu0 %v894
    %1087 = vmatpush.msra.mxu0 %v892
    %1088 = vmatpush.msra.mxu0 %v890
    %1089 = vmatpush.msra.mxu0 %v888
    %1090 = vmatpush.msra.mxu0 %v886
    %1091 = vmatpush.msra.mxu0 %v884
    %1092 = vmatpush.msra.mxu0 %v882
    %1093 = vmatpush.msra.mxu0 %v880
    %1094 = vmatpush.msra.mxu0 %v878
    %1095 = vmatpush.msra.mxu0 %v876
    %1096 = vmatpush.msra.mxu0 %v874
    %1097 = vmatpush.msra.mxu0 %v872
    %1098 = vmatpush.msra.mxu0 %v870
    %1099 = vmatpush.msra.mxu0 %v868
    %1100 = vmatmul.f32.gmra.mxu0 %v824
    %v1101 = vpop.f32.mrf.mxu0
    %v1102 = vadd.f32 %v1079, %v1101
    %1103 = vmatmul.f32.gmra.mxu0 %v830
    %v1104 = vpop.f32.mrf.mxu0
    %v1105 = vadd.f32 %v1082, %v1104
    %1106 = vdwg.mxu0
    %1107 = vmatpush.msra.mxu0 %v930
    %1108 = vmatpush.msra.mxu0 %v928
    %1109 = vmatpush.msra.mxu0 %v926
    %1110 = vmatpush.msra.mxu0 %v924
    %1111 = vmatpush.msra.mxu0 %v922
    %1112 = vmatpush.msra.mxu0 %v920
    %1113 = vmatpush.msra.mxu0 %v918
    %1114 = vmatpush.msra.mxu0 %v916
    %1115 = vmatpush.msra.mxu0 %v914
    %1116 = vmatpush.msra.mxu0 %v912
    %1117 = vmatpush.msra.mxu0 %v910
    %1118 = vmatpush.msra.mxu0 %v908
    %1119 = vmatpush.msra.mxu0 %v906
    %1120 = vmatpush.msra.mxu0 %v904
    %1121 = vmatpush.msra.mxu0 %v902
    %1122 = vmatpush.msra.mxu0 %v900
    %1123 = vmatmul.f32.gmra.mxu0 %v825
    %v1124 = vpop.f32.mrf.mxu0
    %v1125 = vadd.f32 %v1102, %v1124
    %1126 = vmatmul.f32.gmra.mxu0 %v831
    %v1127 = vpop.f32.mrf.mxu0
    %v1128 = vadd.f32 %v1105, %v1127
    %1129 = vdwg.mxu0
    %1130 = vmatpush.msra.mxu0 %v962
    %1131 = vmatpush.msra.mxu0 %v960
    %1132 = vmatpush.msra.mxu0 %v958
    %1133 = vmatpush.msra.mxu0 %v956
    %1134 = vmatpush.msra.mxu0 %v954
    %1135 = vmatpush.msra.mxu0 %v952
    %1136 = vmatpush.msra.mxu0 %v950
    %1137 = vmatpush.msra.mxu0 %v948
    %1138 = vmatpush.msra.mxu0 %v946
    %1139 = vmatpush.msra.mxu0 %v944
    %1140 = vmatpush.msra.mxu0 %v942
    %1141 = vmatpush.msra.mxu0 %v940
    %1142 = vmatpush.msra.mxu0 %v938
    %1143 = vmatpush.msra.mxu0 %v936
    %1144 = vmatpush.msra.mxu0 %v934
    %1145 = vmatpush.msra.mxu0 %v932
    %1146 = vmatmul.f32.gmra.mxu0 %v826
    %v1147 = vpop.f32.mrf.mxu0
    %v1148 = vadd.f32 %v1125, %v1147
    %1149 = vmatmul.f32.gmra.mxu0 %v832
    %v1150 = vpop.f32.mrf.mxu0
    %v1151 = vadd.f32 %v1128, %v1150
    %1152 = vdwg.mxu0
    %v1153 = vmul.f32 %v1056, 0.5
    %v1154 = vmul.f32 %v1148, 0.5
    %v1155 = vmul.f32 %v1059, 0.5
    %v1156 = vmul.f32 %v1151, 0.5
    %v1157 = vmul.f32 %v1056, 0.70710677
    %v1158 = vmul.f32 %v1148, 0.70710677
    %v1159 = vmul.f32 %v1059, 0.70710677
    %v1160 = vmul.f32 %v1151, 0.70710677
    %v1161 = vmul.f32 %v1157, %v1157
    %v1162 = vmin.f32 16.0, %v1161
    %v1163 = vmul.f32 %v1162, 2.1237322e-06
    %v1164 = vadd.f32 %v1163, 0.00028619796
    %v1165 = vmul.f32 %v1162, %v1164
    %v1166 = vadd.f32 %v1165, 0.0036580483
    %v1167 = vmul.f32 %v1162, %v1166
    %v1168 = vadd.f32 %v1167, 0.05243302
    %v1169 = vmul.f32 %v1162, %v1168
    %v1170 = vadd.f32 %v1169, 0.18741608
    %v1171 = vmul.f32 %v1162, %v1170
    %v1172 = vadd.f32 %v1171, 1.1283791
    %v1173 = vmul.f32 %v1157, %v1172
    %v1174 = vmul.f32 %v1162, 3.8918573e-05
    %v1175 = vadd.f32 %v1174, 0.001143296
    %v1176 = vmul.f32 %v1162, %v1175
    %v1177 = vadd.f32 %v1176, 0.014752088
    %v1178 = vmul.f32 %v1162, %v1177
    %v1179 = vadd.f32 %v1178, 0.112945676
    %v1180 = vmul.f32 %v1162, %v1179
    %v1181 = vadd.f32 %v1180, 0.4994258
    %v1182 = vmul.f32 %v1162, %v1181
    %v1183 = vadd.f32 %v1182, 1.0
    %v1184 = vrcp.pop %v1183
    %v1185 = vmul.f32 %v1183, %v1184
    %v1186 = vsub.f32 1.0, %v1185
    %v1187 = vmul.f32 %v1184, %v1186
    %v1188 = vadd.f32 %v1184, %v1187
    %vm1189 = vweird.f32 %v1183
    %vm1190 = vweird.f32 %v1184
    %vm1191 = vmor %vm1189, %vm1190
    %v1192 = vsel %vm1191, %v1184, %v1188
    %v1193 = vand.u32 2147483647, %v1183
    %vm1194 = vcmp.eq.f32.partialorder %v1193, 8.507059e+37
    %v1195 = vand.u32 %v1183, 2147483648
    %v1196 = vor.u32 1.1754944e-38, %v1195
    %v1197 = vsel %vm1194, %v1196, %v1192
    %v1198 = vmul.f32 %v1173, %v1197
    %v1199 = vmin.f32 %v1198, 1.0
    %v1200 = vmax.f32 %v1199, -1.0
    %v1201 = vmul.f32 %v1158, %v1158
    %v1202 = vmin.f32 16.0, %v1201
    %v1203 = vmul.f32 %v1202, 2.1237322e-06
    %v1204 = vadd.f32 %v1203, 0.00028619796
    %v1205 = vmul.f32 %v1202, %v1204
    %v1206 = vadd.f32 %v1205, 0.0036580483
    %v1207 = vmul.f32 %v1202, %v1206
    %v1208 = vadd.f32 %v1207, 0.05243302
    %v1209 = vmul.f32 %v1202, %v1208
    %v1210 = vadd.f32 %v1209, 0.18741608
    %v1211 = vmul.f32 %v1202, %v1210
    %v1212 = vadd.f32 %v1211, 1.1283791
    %v1213 = vmul.f32 %v1158, %v1212
    %v1214 = vmul.f32 %v1202, 3.8918573e-05
    %v1215 = vadd.f32 %v1214, 0.001143296
    %v1216 = vmul.f32 %v1202, %v1215
    %v1217 = vadd.f32 %v1216, 0.014752088
    %v1218 = vmul.f32 %v1202, %v1217
    %v1219 = vadd.f32 %v1218, 0.112945676
    %v1220 = vmul.f32 %v1202, %v1219
    %v1221 = vadd.f32 %v1220, 0.4994258
    %v1222 = vmul.f32 %v1202, %v1221
    %v1223 = vadd.f32 %v1222, 1.0
    %v1224 = vrcp.pop %v1223
    %v1225 = vmul.f32 %v1223, %v1224
    %v1226 = vsub.f32 1.0, %v1225
    %v1227 = vmul.f32 %v1224, %v1226
    %v1228 = vadd.f32 %v1224, %v1227
    %vm1229 = vweird.f32 %v1223
    %vm1230 = vweird.f32 %v1224
    %vm1231 = vmor %vm1229, %vm1230
    %v1232 = vsel %vm1231, %v1224, %v1228
    %v1233 = vand.u32 2147483647, %v1223
    %vm1234 = vcmp.eq.f32.partialorder %v1233, 8.507059e+37
    %v1235 = vand.u32 %v1223, 2147483648
    %v1236 = vor.u32 1.1754944e-38, %v1235
    %v1237 = vsel %vm1234, %v1236, %v1232
    %v1238 = vmul.f32 %v1213, %v1237
    %v1239 = vmin.f32 %v1238, 1.0
    %v1240 = vmax.f32 %v1239, -1.0
    %v1241 = vmul.f32 %v1159, %v1159
    %v1242 = vmin.f32 16.0, %v1241
    %v1243 = vmul.f32 %v1242, 2.1237322e-06
    %v1244 = vadd.f32 %v1243, 0.00028619796
    %v1245 = vmul.f32 %v1242, %v1244
    %v1246 = vadd.f32 %v1245, 0.0036580483
    %v1247 = vmul.f32 %v1242, %v1246
    %v1248 = vadd.f32 %v1247, 0.05243302
    %v1249 = vmul.f32 %v1242, %v1248
    %v1250 = vadd.f32 %v1249, 0.18741608
    %v1251 = vmul.f32 %v1242, %v1250
    %v1252 = vadd.f32 %v1251, 1.1283791
    %v1253 = vmul.f32 %v1159, %v1252
    %v1254 = vmul.f32 %v1242, 3.8918573e-05
    %v1255 = vadd.f32 %v1254, 0.001143296
    %v1256 = vmul.f32 %v1242, %v1255
    %v1257 = vadd.f32 %v1256, 0.014752088
    %v1258 = vmul.f32 %v1242, %v1257
    %v1259 = vadd.f32 %v1258, 0.112945676
    %v1260 = vmul.f32 %v1242, %v1259
    %v1261 = vadd.f32 %v1260, 0.4994258
    %v1262 = vmul.f32 %v1242, %v1261
    %v1263 = vadd.f32 %v1262, 1.0
    %v1264 = vrcp.pop %v1263
    %v1265 = vmul.f32 %v1263, %v1264
    %v1266 = vsub.f32 1.0, %v1265
    %v1267 = vmul.f32 %v1264, %v1266
    %v1268 = vadd.f32 %v1264, %v1267
    %vm1269 = vweird.f32 %v1263
    %vm1270 = vweird.f32 %v1264
    %vm1271 = vmor %vm1269, %vm1270
    %v1272 = vsel %vm1271, %v1264, %v1268
    %v1273 = vand.u32 2147483647, %v1263
    %vm1274 = vcmp.eq.f32.partialorder %v1273, 8.507059e+37
    %v1275 = vand.u32 %v1263, 2147483648
    %v1276 = vor.u32 1.1754944e-38, %v1275
    %v1277 = vsel %vm1274, %v1276, %v1272
    %v1278 = vmul.f32 %v1253, %v1277
    %v1279 = vmin.f32 %v1278, 1.0
    %v1280 = vmax.f32 %v1279, -1.0
    %v1281 = vmul.f32 %v1160, %v1160
    %v1282 = vmin.f32 16.0, %v1281
    %v1283 = vmul.f32 %v1282, 2.1237322e-06
    %v1284 = vadd.f32 %v1283, 0.00028619796
    %v1285 = vmul.f32 %v1282, %v1284
    %v1286 = vadd.f32 %v1285, 0.0036580483
    %v1287 = vmul.f32 %v1282, %v1286
    %v1288 = vadd.f32 %v1287, 0.05243302
    %v1289 = vmul.f32 %v1282, %v1288
    %v1290 = vadd.f32 %v1289, 0.18741608
    %v1291 = vmul.f32 %v1282, %v1290
    %v1292 = vadd.f32 %v1291, 1.1283791
    %v1293 = vmul.f32 %v1160, %v1292
    %v1294 = vmul.f32 %v1282, 3.8918573e-05
    %v1295 = vadd.f32 %v1294, 0.001143296
    %v1296 = vmul.f32 %v1282, %v1295
    %v1297 = vadd.f32 %v1296, 0.014752088
    %v1298 = vmul.f32 %v1282, %v1297
    %v1299 = vadd.f32 %v1298, 0.112945676
    %v1300 = vmul.f32 %v1282, %v1299
    %v1301 = vadd.f32 %v1300, 0.4994258
    %v1302 = vmul.f32 %v1282, %v1301
    %v1303 = vadd.f32 %v1302, 1.0
    %v1304 = vrcp.pop %v1303
    %v1305 = vmul.f32 %v1303, %v1304
    %v1306 = vsub.f32 1.0, %v1305
    %v1307 = vmul.f32 %v1304, %v1306
    %v1308 = vadd.f32 %v1304, %v1307
    %vm1309 = vweird.f32 %v1303
    %vm1310 = vweird.f32 %v1304
    %vm1311 = vmor %vm1309, %vm1310
    %v1312 = vsel %vm1311, %v1304, %v1308
    %v1313 = vand.u32 2147483647, %v1303
    %vm1314 = vcmp.eq.f32.partialorder %v1313, 8.507059e+37
    %v1315 = vand.u32 %v1303, 2147483648
    %v1316 = vor.u32 1.1754944e-38, %v1315
    %v1317 = vsel %vm1314, %v1316, %v1312
    %v1318 = vmul.f32 %v1293, %v1317
    %v1319 = vmin.f32 %v1318, 1.0
    %v1320 = vmax.f32 %v1319, -1.0
    %v1321 = vadd.f32 %v1200, 1.0
    %v1322 = vadd.f32 %v1240, 1.0
    %v1323 = vadd.f32 %v1280, 1.0
    %v1324 = vadd.f32 %v1320, 1.0
    %v1325 = vmul.f32 %v1153, %v1321
    %v1326 = vmul.f32 %v1154, %v1322
    %v1327 = vmul.f32 %v1155, %v1323
    %v1328 = vmul.f32 %v1156, %v1324
    %v1329 = vld [vmem:[#allocation10] sm:$0xff]
    %v1330 = vld [vmem:[#allocation10 + $0x8] sm:$0xff]
    %v1331 = vld [vmem:[#allocation10 + $0x10] sm:$0xff]
    %v1332 = vld [vmem:[#allocation10 + $0x18] sm:$0xff]
    %v1333 = vld [vmem:[#allocation10 + $0x20] sm:$0xff]
    %v1334 = vld [vmem:[#allocation10 + $0x28] sm:$0xff]
    %v1335 = vld [vmem:[#allocation10 + $0x30] sm:$0xff]
    %v1336 = vld [vmem:[#allocation10 + $0x38] sm:$0xff]
    %v1337 = vld [vmem:[#allocation10 + $0x40] sm:$0xff]
    %v1338 = vld [vmem:[#allocation10 + $0x48] sm:$0xff]
    %v1339 = vld [vmem:[#allocation10 + $0x50] sm:$0xff]
    %v1340 = vld [vmem:[#allocation10 + $0x58] sm:$0xff]
    %v1341 = vld [vmem:[#allocation10 + $0x60] sm:$0xff]
    %v1342 = vld [vmem:[#allocation10 + $0x68] sm:$0xff]
    %v1343 = vld [vmem:[#allocation10 + $0x70] sm:$0xff]
    %v1344 = vld [vmem:[#allocation10 + $0x78] sm:$0xff]
    %v1345 = vld [vmem:[#allocation10 + $0x80] sm:$0xff]
    %v1346 = vld [vmem:[#allocation10 + $0x88] sm:$0xff]
    %v1347 = vld [vmem:[#allocation10 + $0x90] sm:$0xff]
    %v1348 = vld [vmem:[#allocation10 + $0x98] sm:$0xff]
    %v1349 = vld [vmem:[#allocation10 + $0xa0] sm:$0xff]
    %v1350 = vld [vmem:[#allocation10 + $0xa8] sm:$0xff]
    %v1351 = vld [vmem:[#allocation10 + $0xb0] sm:$0xff]
    %v1352 = vld [vmem:[#allocation10 + $0xb8] sm:$0xff]
    %v1353 = vld [vmem:[#allocation10 + $0xc0] sm:$0xff]
    %v1354 = vld [vmem:[#allocation10 + $0xc8] sm:$0xff]
    %v1355 = vld [vmem:[#allocation10 + $0xd0] sm:$0xff]
    %v1356 = vld [vmem:[#allocation10 + $0xd8] sm:$0xff]
    %v1357 = vld [vmem:[#allocation10 + $0xe0] sm:$0xff]
    %v1358 = vld [vmem:[#allocation10 + $0xe8] sm:$0xff]
    %v1359 = vld [vmem:[#allocation10 + $0xf0] sm:$0xff]
    %v1360 = vld [vmem:[#allocation10 + $0xf8] sm:$0xff]
    %v1361 = vld [vmem:[#allocation11] sm:$0xff]
    %v1362 = vld [vmem:[#allocation11 + $0x8] sm:$0xff]
    %v1363 = vld [vmem:[#allocation11 + $0x10] sm:$0xff]
    %v1364 = vld [vmem:[#allocation11 + $0x18] sm:$0xff]
    %v1365 = vld [vmem:[#allocation11 + $0x20] sm:$0xff]
    %v1366 = vld [vmem:[#allocation11 + $0x28] sm:$0xff]
    %v1367 = vld [vmem:[#allocation11 + $0x30] sm:$0xff]
    %v1368 = vld [vmem:[#allocation11 + $0x38] sm:$0xff]
    %v1369 = vld [vmem:[#allocation11 + $0x40] sm:$0xff]
    %v1370 = vld [vmem:[#allocation11 + $0x48] sm:$0xff]
    %v1371 = vld [vmem:[#allocation11 + $0x50] sm:$0xff]
    %v1372 = vld [vmem:[#allocation11 + $0x58] sm:$0xff]
    %v1373 = vld [vmem:[#allocation11 + $0x60] sm:$0xff]
    %v1374 = vld [vmem:[#allocation11 + $0x68] sm:$0xff]
    %v1375 = vld [vmem:[#allocation11 + $0x70] sm:$0xff]
    %v1376 = vld [vmem:[#allocation11 + $0x78] sm:$0xff]
    %v1377 = vld [vmem:[#allocation11 + $0x80] sm:$0xff]
    %v1378 = vld [vmem:[#allocation11 + $0x88] sm:$0xff]
    %v1379 = vld [vmem:[#allocation11 + $0x90] sm:$0xff]
    %v1380 = vld [vmem:[#allocation11 + $0x98] sm:$0xff]
    %v1381 = vld [vmem:[#allocation11 + $0xa0] sm:$0xff]
    %v1382 = vld [vmem:[#allocation11 + $0xa8] sm:$0xff]
    %v1383 = vld [vmem:[#allocation11 + $0xb0] sm:$0xff]
    %v1384 = vld [vmem:[#allocation11 + $0xb8] sm:$0xff]
    %v1385 = vld [vmem:[#allocation11 + $0xc0] sm:$0xff]
    %v1386 = vld [vmem:[#allocation11 + $0xc8] sm:$0xff]
    %v1387 = vld [vmem:[#allocation11 + $0xd0] sm:$0xff]
    %v1388 = vld [vmem:[#allocation11 + $0xd8] sm:$0xff]
    %v1389 = vld [vmem:[#allocation11 + $0xe0] sm:$0xff]
    %v1390 = vld [vmem:[#allocation11 + $0xe8] sm:$0xff]
    %v1391 = vld [vmem:[#allocation11 + $0xf0] sm:$0xff]
    %v1392 = vld [vmem:[#allocation11 + $0xf8] sm:$0xff]
    %1393 = vmatpush.msra.mxu0 %v1376
    %1394 = vmatpush.msra.mxu0 %v1375
    %1395 = vmatpush.msra.mxu0 %v1374
    %1396 = vmatpush.msra.mxu0 %v1373
    %1397 = vmatpush.msra.mxu0 %v1372
    %1398 = vmatpush.msra.mxu0 %v1371
    %1399 = vmatpush.msra.mxu0 %v1370
    %1400 = vmatpush.msra.mxu0 %v1369
    %1401 = vmatpush.msra.mxu0 %v1368
    %1402 = vmatpush.msra.mxu0 %v1367
    %1403 = vmatpush.msra.mxu0 %v1366
    %1404 = vmatpush.msra.mxu0 %v1365
    %1405 = vmatpush.msra.mxu0 %v1364
    %1406 = vmatpush.msra.mxu0 %v1363
    %1407 = vmatpush.msra.mxu0 %v1362
    %1408 = vmatpush.msra.mxu0 %v1361
    %1409 = vmatmul.f32.gmra.mxu0 %v827
    %v1410 = vpop.f32.mrf.mxu0
    %v1411 = vadd.f32 0.0, %v1410
    %1412 = vmatmul.f32.gmra.mxu0 %v833
    %v1413 = vpop.f32.mrf.mxu0
    %v1414 = vadd.f32 0.0, %v1413
    %1415 = vdwg.mxu0
    %1416 = vmatpush.msra.mxu0 %v1392
    %1417 = vmatpush.msra.mxu0 %v1391
    %1418 = vmatpush.msra.mxu0 %v1390
    %1419 = vmatpush.msra.mxu0 %v1389
    %1420 = vmatpush.msra.mxu0 %v1388
    %1421 = vmatpush.msra.mxu0 %v1387
    %1422 = vmatpush.msra.mxu0 %v1386
    %1423 = vmatpush.msra.mxu0 %v1385
    %1424 = vmatpush.msra.mxu0 %v1384
    %1425 = vmatpush.msra.mxu0 %v1383
    %1426 = vmatpush.msra.mxu0 %v1382
    %1427 = vmatpush.msra.mxu0 %v1381
    %1428 = vmatpush.msra.mxu0 %v1380
    %1429 = vmatpush.msra.mxu0 %v1379
    %1430 = vmatpush.msra.mxu0 %v1378
    %1431 = vmatpush.msra.mxu0 %v1377
    %1432 = vmatmul.f32.gmra.mxu0 %v828
    %v1433 = vpop.f32.mrf.mxu0
    %v1434 = vadd.f32 %v1411, %v1433
    %1435 = vmatmul.f32.gmra.mxu0 %v834
    %v1436 = vpop.f32.mrf.mxu0
    %v1437 = vadd.f32 %v1414, %v1436
    %1438 = vdwg.mxu0
    %1439 = vmatpush.msra.mxu0 %v1344
    %1440 = vmatpush.msra.mxu0 %v1343
    %1441 = vmatpush.msra.mxu0 %v1342
    %1442 = vmatpush.msra.mxu0 %v1341
    %1443 = vmatpush.msra.mxu0 %v1340
    %1444 = vmatpush.msra.mxu0 %v1339
    %1445 = vmatpush.msra.mxu0 %v1338
    %1446 = vmatpush.msra.mxu0 %v1337
    %1447 = vmatpush.msra.mxu0 %v1336
    %1448 = vmatpush.msra.mxu0 %v1335
    %1449 = vmatpush.msra.mxu0 %v1334
    %1450 = vmatpush.msra.mxu0 %v1333
    %1451 = vmatpush.msra.mxu0 %v1332
    %1452 = vmatpush.msra.mxu0 %v1331
    %1453 = vmatpush.msra.mxu0 %v1330
    %1454 = vmatpush.msra.mxu0 %v1329
    %1455 = vmatmul.f32.gmra.mxu0 %v1325
    %v1456 = vpop.f32.mrf.mxu0
    %v1457 = vadd.f32 %v1434, %v1456
    %1458 = vmatmul.f32.gmra.mxu0 %v1327
    %v1459 = vpop.f32.mrf.mxu0
    %v1460 = vadd.f32 %v1437, %v1459
    %1461 = vdwg.mxu0
    %1462 = vmatpush.msra.mxu0 %v1360
    %1463 = vmatpush.msra.mxu0 %v1359
    %1464 = vmatpush.msra.mxu0 %v1358
    %1465 = vmatpush.msra.mxu0 %v1357
    %1466 = vmatpush.msra.mxu0 %v1356
    %1467 = vmatpush.msra.mxu0 %v1355
    %1468 = vmatpush.msra.mxu0 %v1354
    %1469 = vmatpush.msra.mxu0 %v1353
    %1470 = vmatpush.msra.mxu0 %v1352
    %1471 = vmatpush.msra.mxu0 %v1351
    %1472 = vmatpush.msra.mxu0 %v1350
    %1473 = vmatpush.msra.mxu0 %v1349
    %1474 = vmatpush.msra.mxu0 %v1348
    %1475 = vmatpush.msra.mxu0 %v1347
    %1476 = vmatpush.msra.mxu0 %v1346
    %1477 = vmatpush.msra.mxu0 %v1345
    %1478 = vmatmul.f32.gmra.mxu0 %v1326
    %v1479 = vpop.f32.mrf.mxu0
    %v1480 = vadd.f32 %v1457, %v1479
    %1481 = vmatmul.f32.gmra.mxu0 %v1328
    %v1482 = vpop.f32.mrf.mxu0
    %v1483 = vadd.f32 %v1460, %v1482
    %1484 = vdwg.mxu0
    %v1485 = vld [vmem:[%s7] sm:$0x1]
    %v1487 = vperm.slane %v1485, 0
    %v1489 = vadd.f32 %v1480, %v1487
    %v1490 = vadd.f32 %v1483, %v1487
    %1491 = vst [vmem:[#allocation13] sm:$0xff] %v1489
    %1492 = vst [vmem:[#allocation13 + $0x8] sm:$0xff] %v1490
    // Predicated region
    $region58: #{tpu_custom_call.1} parent=1 // pred_check
      _
    $region59: #{tpu_custom_call.1} parent=1 // pred_check_branch
      %1494 = sbr.rel (0) target = $region61
    $region60: #{tpu_custom_call.1} parent=1 // pred_region
      %1496 = vsyncadd [#allocation4], 224
      %s1497 = sshll.u32 [#allocation13], 4
      %s1498 = int_to_ptr.vmem [resolvable:$true] %s1497
      %s1499 = sshll.u32 %s8, 4
      %s1500 = int_to_ptr.hbm [resolvable:$true] %s1499
      %1505 = dma.vmem_to_hbm [thread:$0]  %s1498, 32, %s1500, [#allocation4], 32, 32, 2
    $region61: #{tpu_custom_call.1} parent=1 // pred_fallthru
      _
    // Predicated region
    $region62: #{tpu_custom_call.1} parent=1 // pred_check
      _
    $region63: #{tpu_custom_call.1} parent=1 // pred_check_branch
      %1507 = sbr.rel (0) target = $region65
    $region64: #{tpu_custom_call.1} parent=1 // pred_region
      %1509 = dma.done [#allocation4], 256
    $region65: #{tpu_custom_call.1} parent=1 // pred_fallthru
      _
    %1510 = vsyncpa [#allocation3], 1
    %1511 = vsyncpa [#allocation6], 1
    %1512 = vsyncpa [#allocation9], 1
    %1513 = vsyncpa [#allocation12], 1
    %1514 = vsyncpa [#allocation4], 1

</llo_original>
